<compile_context>
chip_gen: v5e
topology: v5e:2x2
jax: 0.10.0
libtpu: 0.0.40
codegen_flags: <defaults>
</compile_context>

<pallas_src>
from functools import partial
from types import SimpleNamespace

import numpy as np
import jax
import jax.numpy as jnp
from jax import lax
from jax.experimental import pallas as pl
from jax.experimental.pallas import tpu as pltpu


def _round_up(x, m):
    return (x + m - 1) // m * m


# ----------------------------------------------------------------------------
# Pallas kernels
# ----------------------------------------------------------------------------
def _l2norm_kernel(x_ref, o_ref):
    # torch: x / (||x||_2 + 1e-12); zero-padded rows/cols stay zero.
    x = x_ref[...]
    o_ref[...] = x / (jnp.sqrt(jnp.sum(x * x, axis=-1, keepdims=True)) + 1e-12)


def _fused_cross_camera_kernel(f_ref, a_ref, g_ref, cb_ref,
                               edge_ref, lp_ref, fn_ref, an_ref,
                               *, num_cams, classes_per_cam):
    """Single fused launch.

    Inputs (all f32, zero-padded to 128-lane tiles):
      f_ref : [B, Dp]   raw features
      a_ref : [Cp, Dp]  raw cross anchors stacked [cam*C + class, D]
      g_ref : [B, 1]    global batch-anchor index = cams*C + labels
      cb_ref: [B, 1]    camera id of each sample
    Outputs (lane-dense, last dim multiple of 128):
      edge_ref: [B, 128]  packed [rank(NC) | rank1(NC) | score(NC) | self_score]
      lp_ref  : [B, Cp]   per-camera log-softmax of features_n @ anchors_n^T
      fn_ref  : [B, Dp]   normalized features
      an_ref  : [Cp, Dp]  normalized anchors
    """
    NC, C = num_cams, classes_per_cam
    B, Dp = f_ref.shape
    Cp = a_ref.shape[0]
    EPAD = edge_ref.shape[1]
    BIG = jnp.float32(1e30)

    f = f_ref[...]
    a = a_ref[...]
    gl = g_ref[...]                                   # [B, 1] f32 (exact small ints)
    cb = cb_ref[...]                                  # [B, 1] f32

    # ---- L2 normalization (torch: x / (norm + 1e-12)) -----------------------
    fn = f / (jnp.sqrt(jnp.sum(f * f, axis=-1, keepdims=True)) + 1e-12)
    an = a / (jnp.sqrt(jnp.sum(a * a, axis=-1, keepdims=True)) + 1e-12)
    fn_ref[...] = fn
    an_ref[...] = an

    # Column index along the stacked-anchor axis (small ints exact in f32).
    col = lax.broadcasted_iota(jnp.int32, (B, Cp), 1).astype(jnp.float32)

    # ---- per-sample batch anchor A[b] = an[cams[b]*C+labels[b]] (one-hot MXU gather)
    A = jnp.dot((col == gl).astype(jnp.float32), an,
                preferred_element_type=jnp.float32)                    # [B, Dp]

    # ||anchor_k||^2 broadcast to [B, Cp] via a ones-matmul (lane-major, no transpose)
    ansq = lax.dot_general(jnp.ones((B, Dp), jnp.float32), an * an,
                           (((1,), (1,)), ((), ())),
                           preferred_element_type=jnp.float32)         # [B, Cp]
    A_sq = jnp.sum(A * A, axis=-1, keepdims=True)                      # [B, 1]
    a_norm = jnp.sqrt(A_sq)

    # squared euclidean distances A -> every anchor of every camera (one matmul)
    d1 = jnp.maximum(
        A_sq + ansq - 2.0 * lax.dot_general(A, an, (((1,), (1,)), ((), ())),
                                            preferred_element_type=jnp.float32),
        1e-12)

    # ---- per-camera log-softmax of features_n @ anchors_n^T (CE inputs) -----
    logits = lax.dot_general(fn, an, (((1,), (1,)), ((), ())),
                             preferred_element_type=jnp.float32)       # [B, Cp]
    lse = jnp.zeros((B, Cp), jnp.float32)
    for c in range(NC):
        m_c = (col >= c * C) & (col < (c + 1) * C)
        mx = jnp.max(jnp.where(m_c, logits, -BIG), axis=-1, keepdims=True)
        sm = jnp.sum(jnp.where(m_c, jnp.exp(logits - mx), 0.0),
                     axis=-1, keepdims=True)
        lse = jnp.where(m_c, mx + jnp.log(sm), lse)
    lp_ref[...] = logits - lse

    # ---- edge quantities: rank / rank1 / cosine score per other camera ------
    ecol = lax.broadcasted_iota(jnp.int32, (B, EPAD), 1).astype(jnp.float32)
    packed = jnp.zeros((B, EPAD), jnp.float32)
    m_same = (col >= cb * C) & (col < (cb + 1.0) * C)    # sample's own-camera columns

    for oc in range(NC):
        m_oc = (col >= oc * C) & (col < (oc + 1) * C)
        d1m = jnp.where(m_oc, d1, BIG)
        mn1 = jnp.min(d1m, axis=-1, keepdims=True)
        idx1 = jnp.min(jnp.where(d1m == mn1, col, jnp.float32(Cp)),
                       axis=-1, keepdims=True)           # first minimum == argmin
        rank_oc = idx1 - oc * C                          # local index in camera oc

        # rank-1 anchor rows of camera `oc` (one-hot MXU gather)
        R = jnp.dot((col == idx1).astype(jnp.float32), an,
                    preferred_element_type=jnp.float32)  # [B, Dp]
        R_sq = jnp.sum(R * R, axis=-1, keepdims=True)
        d2 = jnp.maximum(
            R_sq + ansq - 2.0 * lax.dot_general(R, an, (((1,), (1,)), ((), ())),
                                                preferred_element_type=jnp.float32),
            1e-12)
        d2m = jnp.where(m_same, d2, BIG)
        mn2 = jnp.min(d2m, axis=-1, keepdims=True)
        idx2 = jnp.min(jnp.where(d2m == mn2, col, jnp.float32(Cp)),
                       axis=-1, keepdims=True)
        rank1_oc = idx2 - cb * C                         # local index in own camera

        score_oc = (jnp.sum(A * R, axis=-1, keepdims=True)
                    / jnp.maximum(a_norm * jnp.sqrt(R_sq), 1e-8))  # torch cosine eps

        packed = jnp.where(ecol == oc, rank_oc, packed)
        packed = jnp.where(ecol == NC + oc, rank1_oc, packed)
        packed = jnp.where(ecol == 2 * NC + oc, score_oc, packed)

    self_score = A_sq / jnp.maximum(a_norm * a_norm, 1e-8)
    packed = jnp.where(ecol == 3 * NC, self_score, packed)
    edge_ref[...] = packed


# ----------------------------------------------------------------------------
# Device-side wrappers (single dispatch each)
# ----------------------------------------------------------------------------
@partial(jax.jit, static_argnames=("num_cams", "classes_per_cam"))
def _run_fused(features, cross_anchors, glabel_f, camb_f, *,
               num_cams, classes_per_cam):
    B, D = features.shape
    NC, C = num_cams, classes_per_cam
    NCC = NC * C
    Dp = max(128, _round_up(D, 128))
    Cp = max(128, _round_up(NCC, 128))
    EPAD = 128
    assert 3 * NC + 1 <= EPAD

    f_pad = jnp.zeros((B, Dp), jnp.float32).at[:, :D].set(
        features.astype(jnp.float32))
    a_pad = jnp.zeros((Cp, Dp), jnp.float32).at[:NCC, :D].set(
        cross_anchors.reshape(NCC, D).astype(jnp.float32))
    g2 = glabel_f.reshape(B, 1).astype(jnp.float32)
    c2 = camb_f.reshape(B, 1).astype(jnp.float32)

    kernel = partial(_fused_cross_camera_kernel,
                     num_cams=NC, classes_per_cam=C)
    return pl.pallas_call(
        kernel,
        out_shape=(jax.ShapeDtypeStruct((B, EPAD), jnp.float32),
                   jax.ShapeDtypeStruct((B, Cp), jnp.float32),
                   jax.ShapeDtypeStruct((B, Dp), jnp.float32),
                   jax.ShapeDtypeStruct((Cp, Dp), jnp.float32)),
        grid=(1,),
        in_specs=[pl.BlockSpec((B, Dp), lambda i: (0, 0)),
                  pl.BlockSpec((Cp, Dp), lambda i: (0, 0)),
                  pl.BlockSpec((B, 1), lambda i: (0, 0)),
                  pl.BlockSpec((B, 1), lambda i: (0, 0))],
        out_specs=(pl.BlockSpec((B, EPAD), lambda i: (0, 0)),
                   pl.BlockSpec((B, Cp), lambda i: (0, 0)),
                   pl.BlockSpec((B, Dp), lambda i: (0, 0)),
                   pl.BlockSpec((Cp, Dp), lambda i: (0, 0))),
        compiler_params=pltpu.CompilerParams(
            dimension_semantics=("arbitrary",)),
    )(f_pad, a_pad, g2, c2)


@jax.jit
def _l2_normalize_stacked(x):
    """x: [nc, C, D] -> L2-normalized [nc, C, D] (single padded Pallas tile)."""
    nc, C, D = x.shape
    NCC = nc * C
    Dp = max(128, _round_up(D, 128))
    Cp = max(128, _round_up(NCC, 128))
    xp = jnp.zeros((Cp, Dp), jnp.float32).at[:NCC, :D].set(
        x.reshape(NCC, D).astype(jnp.float32))
    yp = pl.pallas_call(
        _l2norm_kernel,
        out_shape=jax.ShapeDtypeStruct((Cp, Dp), jnp.float32),
        grid=(1,),
        in_specs=[pl.BlockSpec((Cp, Dp), lambda i: (0, 0))],
        out_specs=pl.BlockSpec((Cp, Dp), lambda i: (0, 0)),
    )(xp)
    return yp[:NCC, :D].reshape(nc, C, D)


# ----------------------------------------------------------------------------
# Cross_camera forward (host glue around the single fused Pallas launch)
# ----------------------------------------------------------------------------
class CrossCameraPallas:
    def __init__(self, args):
        self.args = args

    def forward(self, features, labels, cams, intra_anchors, cross_anchors,
                epoch, lr):
        nc = self.args.num_cams
        labels_np = np.asarray(labels).astype(np.int64) - 1      # 0-indexed
        cams_np = np.asarray(cams).astype(np.int64) - 1
        features = jnp.asarray(features, jnp.float32)
        cross_anchors = jnp.asarray(cross_anchors, jnp.float32)  # [nc, C, D]
        C, D = int(cross_anchors.shape[1]), int(cross_anchors.shape[2])
        B = int(features.shape[0])

        if epoch > self.args.warm_up_epochs:
            glabel_f = jnp.asarray(cams_np * C + labels_np, jnp.float32)
            camb_f = jnp.asarray(cams_np, jnp.float32)
            edge_d, lp_d, fn_d, an_d = _run_fused(
                features, cross_anchors, glabel_f, camb_f,
                num_cams=nc, classes_per_cam=C)
            # one bulk device->host transfer; everything below is numpy/python
            edge_h, lp_h, fn_h, an_h = jax.device_get((edge_d, lp_d, fn_d, an_d))
            NCC = nc * C
            rank = np.rint(edge_h[:, 0:nc]).astype(np.int64)
            rank1 = np.rint(edge_h[:, nc:2 * nc]).astype(np.int64)
            score = edge_h[:, 2 * nc:3 * nc]
            self_score = edge_h[:, 3 * nc]
            logprobs = lp_h[:, :NCC]
            features_n = fn_h[:, :D]
            cross_anchors_n = an_h[:NCC, :D].reshape(nc, C, D)

            # TODO(synk): the dict-keyed edge()/loss()/update_cross_anchor()
            # graph bookkeeping below is data-dependent host control flow with
            # no clean Pallas equivalent; it consumes only the bulk kernel
            # outputs (no further device syncs).

            # --- edge(): same keys / same insertion order as the reference ---
            e = {}
            thr = self.args.threshold
            for i in range(nc):
                for b in np.nonzero(cams_np == i)[0]:
                    lbl = int(labels_np[b])
                    e[(i, lbl, i, lbl)] = float(self_score[b])
                    for oc in range(nc):
                        if oc == i:
                            continue
                        if (int(rank1[b, oc]) == lbl
                                and float(score[b, oc]) > thr):
                            e[(i, lbl, oc, int(rank[b, oc]))] = float(score[b, oc])
            kys = list(e.keys())

            # --- loss() + update_cross_anchor() (share e / log-softmax; the
            # reference recomputes identical values in both) -------------------
            x = [cross_anchors_n[c].copy() for c in range(nc)]
            loss_all = []
            for b in range(B):
                cam1, label1 = int(cams_np[b]), int(labels_np[b])
                for num in kys:
                    if cam1 == num[0] and label1 == num[1]:
                        cam2, label2 = num[2], num[3]
                        ce = -float(logprobs[b, cam2 * C + label2])  # CrossEntropy
                        loss_all.append(e[num] * ce)
                        x[cam2][label2] = (x[cam2][label2]
                                           - lr * (1.0 - ce) * e[num] * features_n[b])
            cross_loss = jnp.asarray(sum(loss_all) / len(labels_np), jnp.float32)
            cross_anchors1 = [jnp.asarray(a) for a in x]
        else:
            # warm-up: loss = 0, anchors reset to normalized intra anchors
            cross_loss = jnp.zeros((), jnp.float32)
            intra_n = np.asarray(_l2_normalize_stacked(
                jnp.asarray(intra_anchors, jnp.float32)))
            cross_anchors1 = [jnp.asarray(intra_n[i]) for i in range(nc)]

        return cross_loss, intra_anchors, cross_anchors1


# ----------------------------------------------------------------------------
if __name__ == "__main__":
    args = SimpleNamespace(num_cams=3, warm_up_epochs=0, threshold=0.0, cpu=False)

    B, C, D = 16, 8, 32                     # batch, classes-per-cam, feat dim
    key = jax.random.PRNGKey(0)
    k1, k2, k3, k4, k5 = jax.random.split(key, 5)
    features = jax.random.normal(k1, (B, D), jnp.float32)
    labels = jax.random.randint(k2, (B,), 1, C + 1)            # 1-indexed
    cams = jax.random.randint(k3, (B,), 1, args.num_cams + 1)  # 1-indexed
    intra_anchors = jax.random.normal(k4, (args.num_cams, C, D), jnp.float32)
    cross_anchors = jax.random.normal(k5, (args.num_cams, C, D), jnp.float32)

    model = CrossCameraPallas(args)

    # main (post warm-up) path: single fused Pallas launch
    cross_loss, intra_out, cross_anchors1 = model.forward(
        features, labels, cams, intra_anchors, cross_anchors, epoch=2, lr=0.1)
    jax.block_until_ready(cross_loss)
    for a in cross_anchors1:
        jax.block_until_ready(a)
    assert cross_loss.shape == ()
    assert bool(jnp.isfinite(cross_loss))
    assert len(cross_anchors1) == args.num_cams
    assert all(a.shape == (C, D) for a in cross_anchors1)

    # warm-up path: anchors reset to normalized intra anchors, loss == 0
    warm_loss, _, warm_anchors = model.forward(
        features, labels, cams, intra_anchors, cross_anchors, epoch=0, lr=0.1)
    jax.block_until_ready(warm_loss)
    assert float(warm_loss) == 0.0
    assert all(a.shape == (C, D) for a in warm_anchors)

    print("KERNEL_OK")
</pallas_src>

<mosaic_0001>
module attributes {stable_mosaic.version = 11 : i64} {
  func.func @_fused_cross_camera_kernel(%arg0: i32, %arg1: memref<16x128xf32, #tpu.memory_space<vmem>>, %arg2: memref<128x128xf32, #tpu.memory_space<vmem>>, %arg3: memref<16x1xf32, #tpu.memory_space<vmem>>, %arg4: memref<16x1xf32, #tpu.memory_space<vmem>>, %arg5: memref<16x128xf32, #tpu.memory_space<vmem>>, %arg6: memref<16x128xf32, #tpu.memory_space<vmem>>, %arg7: memref<16x128xf32, #tpu.memory_space<vmem>>, %arg8: memref<128x128xf32, #tpu.memory_space<vmem>>) attributes {dimension_semantics = [#tpu.dimension_semantics<arbitrary>], iteration_bounds = array<i64: 1>, scalar_prefetch = 0 : i64, scratch_operands = 0 : i64, tpu.core_type = #tpu.core_type<tc>, window_params = [{pipeline_mode = #tpu.pipeline_mode<synchronous>, transform_indices = @transform_0, window_bounds = array<i64: 16, 128>}, {pipeline_mode = #tpu.pipeline_mode<synchronous>, transform_indices = @transform_1, window_bounds = array<i64: 128, 128>}, {pipeline_mode = #tpu.pipeline_mode<synchronous>, transform_indices = @transform_2, window_bounds = array<i64: 16, 1>}, {pipeline_mode = #tpu.pipeline_mode<synchronous>, transform_indices = @transform_3, window_bounds = array<i64: 16, 1>}, {pipeline_mode = #tpu.pipeline_mode<synchronous>, transform_indices = @transform_4, window_bounds = array<i64: 16, 128>}, {pipeline_mode = #tpu.pipeline_mode<synchronous>, transform_indices = @transform_5, window_bounds = array<i64: 16, 128>}, {pipeline_mode = #tpu.pipeline_mode<synchronous>, transform_indices = @transform_6, window_bounds = array<i64: 16, 128>}, {pipeline_mode = #tpu.pipeline_mode<synchronous>, transform_indices = @transform_7, window_bounds = array<i64: 128, 128>}]} {
    %c0 = arith.constant 0 : index
    %c0_0 = arith.constant 0 : index
    %0 = vector.load %arg1[%c0, %c0_0] : memref<16x128xf32, #tpu.memory_space<vmem>>, vector<16x128xf32>
    %c0_1 = arith.constant 0 : index
    %c0_2 = arith.constant 0 : index
    %1 = vector.load %arg2[%c0_1, %c0_2] : memref<128x128xf32, #tpu.memory_space<vmem>>, vector<128x128xf32>
    %c0_3 = arith.constant 0 : index
    %c0_4 = arith.constant 0 : index
    %2 = vector.load %arg3[%c0_3, %c0_4] : memref<16x1xf32, #tpu.memory_space<vmem>>, vector<16x1xf32>
    %c0_5 = arith.constant 0 : index
    %c0_6 = arith.constant 0 : index
    %3 = vector.load %arg4[%c0_5, %c0_6] : memref<16x1xf32, #tpu.memory_space<vmem>>, vector<16x1xf32>
    %4 = arith.mulf %0, %0 : vector<16x128xf32>
    %cst = arith.constant dense<0.000000e+00> : vector<16xf32>
    %5 = vector.multi_reduction <add>, %4, %cst [1] : vector<16x128xf32> to vector<16xf32>
    %6 = vector.shape_cast %5 : vector<16xf32> to vector<16x1xf32>
    %7 = math.sqrt %6 : vector<16x1xf32>
    %cst_7 = arith.constant 9.99999996E-13 : f32
    %8 = vector.broadcast %cst_7 : f32 to vector<16x1xf32>
    %9 = arith.addf %7, %8 : vector<16x1xf32>
    %10 = vector.broadcast %9 : vector<16x1xf32> to vector<16x128xf32>
    %11 = arith.divf %0, %10 : vector<16x128xf32>
    %12 = arith.mulf %1, %1 : vector<128x128xf32>
    %cst_8 = arith.constant dense<0.000000e+00> : vector<128xf32>
    %13 = vector.multi_reduction <add>, %12, %cst_8 [1] : vector<128x128xf32> to vector<128xf32>
    %14 = vector.shape_cast %13 : vector<128xf32> to vector<128x1xf32>
    %15 = math.sqrt %14 : vector<128x1xf32>
    %cst_9 = arith.constant 9.99999996E-13 : f32
    %16 = vector.broadcast %cst_9 : f32 to vector<128x1xf32>
    %17 = arith.addf %15, %16 : vector<128x1xf32>
    %18 = vector.broadcast %17 : vector<128x1xf32> to vector<128x128xf32>
    %19 = arith.divf %1, %18 : vector<128x128xf32>
    %c0_10 = arith.constant 0 : index
    %c0_11 = arith.constant 0 : index
    %20 = vector.load %arg7[%c0_10, %c0_11] : memref<16x128xf32, #tpu.memory_space<vmem>>, vector<16x128xf32>
    tpu.vector_store %arg7[%c0_10, %c0_11], %11 {strides = array<i32>} : memref<16x128xf32, #tpu.memory_space<vmem>>, vector<16x128xf32>,
    %c0_12 = arith.constant 0 : index
    %c0_13 = arith.constant 0 : index
    %21 = vector.load %arg8[%c0_12, %c0_13] : memref<128x128xf32, #tpu.memory_space<vmem>>, vector<128x128xf32>
    tpu.vector_store %arg8[%c0_12, %c0_13], %19 {strides = array<i32>} : memref<128x128xf32, #tpu.memory_space<vmem>>, vector<128x128xf32>,
    %22 = tpu.iota {dimensions = array<i32: 1>} : vector<16x128xi32>
    %23 = arith.sitofp %22 : vector<16x128xi32> to vector<16x128xf32>
    %24 = vector.broadcast %2 : vector<16x1xf32> to vector<16x128xf32>
    %25 = arith.cmpf oeq, %23, %24 : vector<16x128xf32>
    %26 = arith.extui %25 : vector<16x128xi1> to vector<16x128xi32>
    %27 = arith.sitofp %26 : vector<16x128xi32> to vector<16x128xf32>
    %cst_14 = arith.constant dense<0.000000e+00> : vector<16x128xf32>
    %28 = tpu.matmul %27, %19, %cst_14 {dimension_numbers = #tpu.dot_dimension_numbers<[1], [0], [0], [1], [0, 0, 1, 1], [], []>} : vector<16x128xf32>, vector<128x128xf32>, vector<16x128xf32> -> vector<16x128xf32>
    %cst_15 = arith.constant 1.000000e+00 : f32
    %29 = vector.broadcast %cst_15 : f32 to vector<16x128xf32>
    %30 = arith.mulf %19, %19 : vector<128x128xf32>
    %cst_16 = arith.constant dense<0.000000e+00> : vector<16x128xf32>
    %31 = tpu.matmul %29, %30, %cst_16 {dimension_numbers = #tpu.dot_dimension_numbers<[1], [1], [0], [0], [0, 0, 1, 0], [], []>} : vector<16x128xf32>, vector<128x128xf32>, vector<16x128xf32> -> vector<16x128xf32>
    %32 = arith.mulf %28, %28 : vector<16x128xf32>
    %cst_17 = arith.constant dense<0.000000e+00> : vector<16xf32>
    %33 = vector.multi_reduction <add>, %32, %cst_17 [1] : vector<16x128xf32> to vector<16xf32>
    %34 = vector.shape_cast %33 : vector<16xf32> to vector<16x1xf32>
    %35 = math.sqrt %34 : vector<16x1xf32>
    %36 = vector.broadcast %34 : vector<16x1xf32> to vector<16x128xf32>
    %37 = arith.addf %36, %31 : vector<16x128xf32>
    %cst_18 = arith.constant dense<0.000000e+00> : vector<16x128xf32>
    %38 = tpu.matmul %28, %19, %cst_18 {dimension_numbers = #tpu.dot_dimension_numbers<[1], [1], [0], [0], [0, 0, 1, 0], [], []>} : vector<16x128xf32>, vector<128x128xf32>, vector<16x128xf32> -> vector<16x128xf32>
    %cst_19 = arith.constant 2.000000e+00 : f32
    %39 = vector.broadcast %cst_19 : f32 to vector<16x128xf32>
    %40 = arith.mulf %39, %38 : vector<16x128xf32>
    %41 = arith.subf %37, %40 : vector<16x128xf32>
    %cst_20 = arith.constant 9.99999996E-13 : f32
    %42 = vector.broadcast %cst_20 : f32 to vector<16x128xf32>
    %43 = arith.maximumf %41, %42 : vector<16x128xf32>
    %cst_21 = arith.constant dense<0.000000e+00> : vector<16x128xf32>
    %44 = tpu.matmul %11, %19, %cst_21 {dimension_numbers = #tpu.dot_dimension_numbers<[1], [1], [0], [0], [0, 0, 1, 0], [], []>} : vector<16x128xf32>, vector<128x128xf32>, vector<16x128xf32> -> vector<16x128xf32>
    %cst_22 = arith.constant 0.000000e+00 : f32
    %45 = vector.broadcast %cst_22 : f32 to vector<16x128xf32>
    %cst_23 = arith.constant 0.000000e+00 : f32
    %46 = vector.broadcast %cst_23 : f32 to vector<16x128xf32>
    %47 = arith.cmpf oge, %23, %46 : vector<16x128xf32>
    %cst_24 = arith.constant 8.000000e+00 : f32
    %48 = vector.broadcast %cst_24 : f32 to vector<16x128xf32>
    %49 = arith.cmpf olt, %23, %48 : vector<16x128xf32>
    %50 = arith.andi %47, %49 : vector<16x128xi1>
    %cst_25 = arith.constant 0.000000e+00 : f32
    %cst_26 = arith.constant 1.000000e+30 : f32
    %51 = arith.subf %cst_25, %cst_26 : f32
    %52 = vector.broadcast %51 : f32 to vector<16x128xf32>
    %53 = arith.select %50, %44, %52 : vector<16x128xi1>, vector<16x128xf32>
    %cst_27 = arith.constant dense<0xFF800000> : vector<16xf32>
    %54 = vector.multi_reduction <maximumf>, %53, %cst_27 [1] : vector<16x128xf32> to vector<16xf32>
    %55 = vector.shape_cast %54 : vector<16xf32> to vector<16x1xf32>
    %56 = vector.broadcast %55 : vector<16x1xf32> to vector<16x128xf32>
    %57 = arith.subf %44, %56 : vector<16x128xf32>
    %58 = math.exp %57 : vector<16x128xf32>
    %cst_28 = arith.constant 0.000000e+00 : f32
    %59 = vector.broadcast %cst_28 : f32 to vector<16x128xf32>
    %60 = arith.select %50, %58, %59 : vector<16x128xi1>, vector<16x128xf32>
    %cst_29 = arith.constant dense<0.000000e+00> : vector<16xf32>
    %61 = vector.multi_reduction <add>, %60, %cst_29 [1] : vector<16x128xf32> to vector<16xf32>
    %62 = vector.shape_cast %61 : vector<16xf32> to vector<16x1xf32>
    %63 = math.log %62 : vector<16x1xf32>
    %64 = arith.addf %55, %63 : vector<16x1xf32>
    %65 = vector.shape_cast %64 : vector<16x1xf32> to vector<16x1xf32>
    %66 = vector.broadcast %65 : vector<16x1xf32> to vector<16x128xf32>
    %67 = arith.select %50, %66, %45 : vector<16x128xi1>, vector<16x128xf32>
    %cst_30 = arith.constant 8.000000e+00 : f32
    %68 = vector.broadcast %cst_30 : f32 to vector<16x128xf32>
    %69 = arith.cmpf oge, %23, %68 : vector<16x128xf32>
    %cst_31 = arith.constant 1.600000e+01 : f32
    %70 = vector.broadcast %cst_31 : f32 to vector<16x128xf32>
    %71 = arith.cmpf olt, %23, %70 : vector<16x128xf32>
    %72 = arith.andi %69, %71 : vector<16x128xi1>
    %cst_32 = arith.constant 0.000000e+00 : f32
    %cst_33 = arith.constant 1.000000e+30 : f32
    %73 = arith.subf %cst_32, %cst_33 : f32
    %74 = vector.broadcast %73 : f32 to vector<16x128xf32>
    %75 = arith.select %72, %44, %74 : vector<16x128xi1>, vector<16x128xf32>
    %cst_34 = arith.constant dense<0xFF800000> : vector<16xf32>
    %76 = vector.multi_reduction <maximumf>, %75, %cst_34 [1] : vector<16x128xf32> to vector<16xf32>
    %77 = vector.shape_cast %76 : vector<16xf32> to vector<16x1xf32>
    %78 = vector.broadcast %77 : vector<16x1xf32> to vector<16x128xf32>
    %79 = arith.subf %44, %78 : vector<16x128xf32>
    %80 = math.exp %79 : vector<16x128xf32>
    %cst_35 = arith.constant 0.000000e+00 : f32
    %81 = vector.broadcast %cst_35 : f32 to vector<16x128xf32>
    %82 = arith.select %72, %80, %81 : vector<16x128xi1>, vector<16x128xf32>
    %cst_36 = arith.constant dense<0.000000e+00> : vector<16xf32>
    %83 = vector.multi_reduction <add>, %82, %cst_36 [1] : vector<16x128xf32> to vector<16xf32>
    %84 = vector.shape_cast %83 : vector<16xf32> to vector<16x1xf32>
    %85 = math.log %84 : vector<16x1xf32>
    %86 = arith.addf %77, %85 : vector<16x1xf32>
    %87 = vector.shape_cast %86 : vector<16x1xf32> to vector<16x1xf32>
    %88 = vector.broadcast %87 : vector<16x1xf32> to vector<16x128xf32>
    %89 = arith.select %72, %88, %67 : vector<16x128xi1>, vector<16x128xf32>
    %cst_37 = arith.constant 1.600000e+01 : f32
    %90 = vector.broadcast %cst_37 : f32 to vector<16x128xf32>
    %91 = arith.cmpf oge, %23, %90 : vector<16x128xf32>
    %cst_38 = arith.constant 2.400000e+01 : f32
    %92 = vector.broadcast %cst_38 : f32 to vector<16x128xf32>
    %93 = arith.cmpf olt, %23, %92 : vector<16x128xf32>
    %94 = arith.andi %91, %93 : vector<16x128xi1>
    %cst_39 = arith.constant 0.000000e+00 : f32
    %cst_40 = arith.constant 1.000000e+30 : f32
    %95 = arith.subf %cst_39, %cst_40 : f32
    %96 = vector.broadcast %95 : f32 to vector<16x128xf32>
    %97 = arith.select %94, %44, %96 : vector<16x128xi1>, vector<16x128xf32>
    %cst_41 = arith.constant dense<0xFF800000> : vector<16xf32>
    %98 = vector.multi_reduction <maximumf>, %97, %cst_41 [1] : vector<16x128xf32> to vector<16xf32>
    %99 = vector.shape_cast %98 : vector<16xf32> to vector<16x1xf32>
    %100 = vector.broadcast %99 : vector<16x1xf32> to vector<16x128xf32>
    %101 = arith.subf %44, %100 : vector<16x128xf32>
    %102 = math.exp %101 : vector<16x128xf32>
    %cst_42 = arith.constant 0.000000e+00 : f32
    %103 = vector.broadcast %cst_42 : f32 to vector<16x128xf32>
    %104 = arith.select %94, %102, %103 : vector<16x128xi1>, vector<16x128xf32>
    %cst_43 = arith.constant dense<0.000000e+00> : vector<16xf32>
    %105 = vector.multi_reduction <add>, %104, %cst_43 [1] : vector<16x128xf32> to vector<16xf32>
    %106 = vector.shape_cast %105 : vector<16xf32> to vector<16x1xf32>
    %107 = math.log %106 : vector<16x1xf32>
    %108 = arith.addf %99, %107 : vector<16x1xf32>
    %109 = vector.shape_cast %108 : vector<16x1xf32> to vector<16x1xf32>
    %110 = vector.broadcast %109 : vector<16x1xf32> to vector<16x128xf32>
    %111 = arith.select %94, %110, %89 : vector<16x128xi1>, vector<16x128xf32>
    %112 = arith.subf %44, %111 : vector<16x128xf32>
    %c0_44 = arith.constant 0 : index
    %c0_45 = arith.constant 0 : index
    %113 = vector.load %arg6[%c0_44, %c0_45] : memref<16x128xf32, #tpu.memory_space<vmem>>, vector<16x128xf32>
    tpu.vector_store %arg6[%c0_44, %c0_45], %112 {strides = array<i32>} : memref<16x128xf32, #tpu.memory_space<vmem>>, vector<16x128xf32>,
    %114 = tpu.iota {dimensions = array<i32: 1>} : vector<16x128xi32>
    %115 = arith.sitofp %114 : vector<16x128xi32> to vector<16x128xf32>
    %cst_46 = arith.constant 0.000000e+00 : f32
    %116 = vector.broadcast %cst_46 : f32 to vector<16x128xf32>
    %cst_47 = arith.constant 8.000000e+00 : f32
    %117 = vector.broadcast %cst_47 : f32 to vector<16x1xf32>
    %118 = arith.mulf %3, %117 : vector<16x1xf32>
    %119 = vector.broadcast %118 : vector<16x1xf32> to vector<16x128xf32>
    %120 = arith.cmpf oge, %23, %119 : vector<16x128xf32>
    %cst_48 = arith.constant 1.000000e+00 : f32
    %121 = vector.broadcast %cst_48 : f32 to vector<16x1xf32>
    %122 = arith.addf %3, %121 : vector<16x1xf32>
    %cst_49 = arith.constant 8.000000e+00 : f32
    %123 = vector.broadcast %cst_49 : f32 to vector<16x1xf32>
    %124 = arith.mulf %122, %123 : vector<16x1xf32>
    %125 = vector.broadcast %124 : vector<16x1xf32> to vector<16x128xf32>
    %126 = arith.cmpf olt, %23, %125 : vector<16x128xf32>
    %127 = arith.andi %120, %126 : vector<16x128xi1>
    %cst_50 = arith.constant 0.000000e+00 : f32
    %128 = vector.broadcast %cst_50 : f32 to vector<16x128xf32>
    %129 = arith.cmpf oge, %23, %128 : vector<16x128xf32>
    %cst_51 = arith.constant 8.000000e+00 : f32
    %130 = vector.broadcast %cst_51 : f32 to vector<16x128xf32>
    %131 = arith.cmpf olt, %23, %130 : vector<16x128xf32>
    %132 = arith.andi %129, %131 : vector<16x128xi1>
    %cst_52 = arith.constant 1.000000e+30 : f32
    %133 = vector.broadcast %cst_52 : f32 to vector<16x128xf32>
    %134 = arith.select %132, %43, %133 : vector<16x128xi1>, vector<16x128xf32>
    %cst_53 = arith.constant dense<0x7F800000> : vector<16xf32>
    %135 = vector.multi_reduction <minimumf>, %134, %cst_53 [1] : vector<16x128xf32> to vector<16xf32>
    %136 = vector.shape_cast %135 : vector<16xf32> to vector<16x1xf32>
    %137 = vector.broadcast %136 : vector<16x1xf32> to vector<16x128xf32>
    %138 = arith.cmpf oeq, %134, %137 : vector<16x128xf32>
    %cst_54 = arith.constant 1.280000e+02 : f32
    %139 = vector.broadcast %cst_54 : f32 to vector<16x128xf32>
    %140 = arith.select %138, %23, %139 : vector<16x128xi1>, vector<16x128xf32>
    %cst_55 = arith.constant dense<0x7F800000> : vector<16xf32>
    %141 = vector.multi_reduction <minimumf>, %140, %cst_55 [1] : vector<16x128xf32> to vector<16xf32>
    %142 = vector.shape_cast %141 : vector<16xf32> to vector<16x1xf32>
    %cst_56 = arith.constant 0.000000e+00 : f32
    %143 = vector.broadcast %cst_56 : f32 to vector<16x1xf32>
    %144 = arith.subf %142, %143 : vector<16x1xf32>
    %145 = vector.broadcast %142 : vector<16x1xf32> to vector<16x128xf32>
    %146 = arith.cmpf oeq, %23, %145 : vector<16x128xf32>
    %147 = arith.extui %146 : vector<16x128xi1> to vector<16x128xi32>
    %148 = arith.sitofp %147 : vector<16x128xi32> to vector<16x128xf32>
    %cst_57 = arith.constant dense<0.000000e+00> : vector<16x128xf32>
    %149 = tpu.matmul %148, %19, %cst_57 {dimension_numbers = #tpu.dot_dimension_numbers<[1], [0], [0], [1], [0, 0, 1, 1], [], []>} : vector<16x128xf32>, vector<128x128xf32>, vector<16x128xf32> -> vector<16x128xf32>
    %150 = arith.mulf %149, %149 : vector<16x128xf32>
    %cst_58 = arith.constant dense<0.000000e+00> : vector<16xf32>
    %151 = vector.multi_reduction <add>, %150, %cst_58 [1] : vector<16x128xf32> to vector<16xf32>
    %152 = vector.shape_cast %151 : vector<16xf32> to vector<16x1xf32>
    %153 = vector.broadcast %152 : vector<16x1xf32> to vector<16x128xf32>
    %154 = arith.addf %153, %31 : vector<16x128xf32>
    %cst_59 = arith.constant dense<0.000000e+00> : vector<16x128xf32>
    %155 = tpu.matmul %149, %19, %cst_59 {dimension_numbers = #tpu.dot_dimension_numbers<[1], [1], [0], [0], [0, 0, 1, 0], [], []>} : vector<16x128xf32>, vector<128x128xf32>, vector<16x128xf32> -> vector<16x128xf32>
    %cst_60 = arith.constant 2.000000e+00 : f32
    %156 = vector.broadcast %cst_60 : f32 to vector<16x128xf32>
    %157 = arith.mulf %156, %155 : vector<16x128xf32>
    %158 = arith.subf %154, %157 : vector<16x128xf32>
    %cst_61 = arith.constant 9.99999996E-13 : f32
    %159 = vector.broadcast %cst_61 : f32 to vector<16x128xf32>
    %160 = arith.maximumf %158, %159 : vector<16x128xf32>
    %cst_62 = arith.constant 1.000000e+30 : f32
    %161 = vector.broadcast %cst_62 : f32 to vector<16x128xf32>
    %162 = arith.select %127, %160, %161 : vector<16x128xi1>, vector<16x128xf32>
    %cst_63 = arith.constant dense<0x7F800000> : vector<16xf32>
    %163 = vector.multi_reduction <minimumf>, %162, %cst_63 [1] : vector<16x128xf32> to vector<16xf32>
    %164 = vector.shape_cast %163 : vector<16xf32> to vector<16x1xf32>
    %165 = vector.broadcast %164 : vector<16x1xf32> to vector<16x128xf32>
    %166 = arith.cmpf oeq, %162, %165 : vector<16x128xf32>
    %cst_64 = arith.constant 1.280000e+02 : f32
    %167 = vector.broadcast %cst_64 : f32 to vector<16x128xf32>
    %168 = arith.select %166, %23, %167 : vector<16x128xi1>, vector<16x128xf32>
    %cst_65 = arith.constant dense<0x7F800000> : vector<16xf32>
    %169 = vector.multi_reduction <minimumf>, %168, %cst_65 [1] : vector<16x128xf32> to vector<16xf32>
    %170 = vector.shape_cast %169 : vector<16xf32> to vector<16x1xf32>
    %cst_66 = arith.constant 8.000000e+00 : f32
    %171 = vector.broadcast %cst_66 : f32 to vector<16x1xf32>
    %172 = arith.mulf %3, %171 : vector<16x1xf32>
    %173 = arith.subf %170, %172 : vector<16x1xf32>
    %174 = arith.mulf %28, %149 : vector<16x128xf32>
    %cst_67 = arith.constant dense<0.000000e+00> : vector<16xf32>
    %175 = vector.multi_reduction <add>, %174, %cst_67 [1] : vector<16x128xf32> to vector<16xf32>
    %176 = vector.shape_cast %175 : vector<16xf32> to vector<16x1xf32>
    %177 = math.sqrt %152 : vector<16x1xf32>
    %178 = arith.mulf %35, %177 : vector<16x1xf32>
    %cst_68 = arith.constant 9.99999993E-9 : f32
    %179 = vector.broadcast %cst_68 : f32 to vector<16x1xf32>
    %180 = arith.maximumf %178, %179 : vector<16x1xf32>
    %181 = arith.divf %176, %180 : vector<16x1xf32>
    %cst_69 = arith.constant 0.000000e+00 : f32
    %182 = vector.broadcast %cst_69 : f32 to vector<16x128xf32>
    %183 = arith.cmpf oeq, %115, %182 : vector<16x128xf32>
    %184 = vector.shape_cast %144 : vector<16x1xf32> to vector<16x1xf32>
    %185 = vector.broadcast %184 : vector<16x1xf32> to vector<16x128xf32>
    %186 = arith.select %183, %185, %116 : vector<16x128xi1>, vector<16x128xf32>
    %cst_70 = arith.constant 3.000000e+00 : f32
    %187 = vector.broadcast %cst_70 : f32 to vector<16x128xf32>
    %188 = arith.cmpf oeq, %115, %187 : vector<16x128xf32>
    %189 = vector.shape_cast %173 : vector<16x1xf32> to vector<16x1xf32>
    %190 = vector.broadcast %189 : vector<16x1xf32> to vector<16x128xf32>
    %191 = arith.select %188, %190, %186 : vector<16x128xi1>, vector<16x128xf32>
    %cst_71 = arith.constant 6.000000e+00 : f32
    %192 = vector.broadcast %cst_71 : f32 to vector<16x128xf32>
    %193 = arith.cmpf oeq, %115, %192 : vector<16x128xf32>
    %194 = vector.shape_cast %181 : vector<16x1xf32> to vector<16x1xf32>
    %195 = vector.broadcast %194 : vector<16x1xf32> to vector<16x128xf32>
    %196 = arith.select %193, %195, %191 : vector<16x128xi1>, vector<16x128xf32>
    %cst_72 = arith.constant 8.000000e+00 : f32
    %197 = vector.broadcast %cst_72 : f32 to vector<16x128xf32>
    %198 = arith.cmpf oge, %23, %197 : vector<16x128xf32>
    %cst_73 = arith.constant 1.600000e+01 : f32
    %199 = vector.broadcast %cst_73 : f32 to vector<16x128xf32>
    %200 = arith.cmpf olt, %23, %199 : vector<16x128xf32>
    %201 = arith.andi %198, %200 : vector<16x128xi1>
    %cst_74 = arith.constant 1.000000e+30 : f32
    %202 = vector.broadcast %cst_74 : f32 to vector<16x128xf32>
    %203 = arith.select %201, %43, %202 : vector<16x128xi1>, vector<16x128xf32>
    %cst_75 = arith.constant dense<0x7F800000> : vector<16xf32>
    %204 = vector.multi_reduction <minimumf>, %203, %cst_75 [1] : vector<16x128xf32> to vector<16xf32>
    %205 = vector.shape_cast %204 : vector<16xf32> to vector<16x1xf32>
    %206 = vector.broadcast %205 : vector<16x1xf32> to vector<16x128xf32>
    %207 = arith.cmpf oeq, %203, %206 : vector<16x128xf32>
    %cst_76 = arith.constant 1.280000e+02 : f32
    %208 = vector.broadcast %cst_76 : f32 to vector<16x128xf32>
    %209 = arith.select %207, %23, %208 : vector<16x128xi1>, vector<16x128xf32>
    %cst_77 = arith.constant dense<0x7F800000> : vector<16xf32>
    %210 = vector.multi_reduction <minimumf>, %209, %cst_77 [1] : vector<16x128xf32> to vector<16xf32>
    %211 = vector.shape_cast %210 : vector<16xf32> to vector<16x1xf32>
    %cst_78 = arith.constant 8.000000e+00 : f32
    %212 = vector.broadcast %cst_78 : f32 to vector<16x1xf32>
    %213 = arith.subf %211, %212 : vector<16x1xf32>
    %214 = vector.broadcast %211 : vector<16x1xf32> to vector<16x128xf32>
    %215 = arith.cmpf oeq, %23, %214 : vector<16x128xf32>
    %216 = arith.extui %215 : vector<16x128xi1> to vector<16x128xi32>
    %217 = arith.sitofp %216 : vector<16x128xi32> to vector<16x128xf32>
    %cst_79 = arith.constant dense<0.000000e+00> : vector<16x128xf32>
    %218 = tpu.matmul %217, %19, %cst_79 {dimension_numbers = #tpu.dot_dimension_numbers<[1], [0], [0], [1], [0, 0, 1, 1], [], []>} : vector<16x128xf32>, vector<128x128xf32>, vector<16x128xf32> -> vector<16x128xf32>
    %219 = arith.mulf %218, %218 : vector<16x128xf32>
    %cst_80 = arith.constant dense<0.000000e+00> : vector<16xf32>
    %220 = vector.multi_reduction <add>, %219, %cst_80 [1] : vector<16x128xf32> to vector<16xf32>
    %221 = vector.shape_cast %220 : vector<16xf32> to vector<16x1xf32>
    %222 = vector.broadcast %221 : vector<16x1xf32> to vector<16x128xf32>
    %223 = arith.addf %222, %31 : vector<16x128xf32>
    %cst_81 = arith.constant dense<0.000000e+00> : vector<16x128xf32>
    %224 = tpu.matmul %218, %19, %cst_81 {dimension_numbers = #tpu.dot_dimension_numbers<[1], [1], [0], [0], [0, 0, 1, 0], [], []>} : vector<16x128xf32>, vector<128x128xf32>, vector<16x128xf32> -> vector<16x128xf32>
    %cst_82 = arith.constant 2.000000e+00 : f32
    %225 = vector.broadcast %cst_82 : f32 to vector<16x128xf32>
    %226 = arith.mulf %225, %224 : vector<16x128xf32>
    %227 = arith.subf %223, %226 : vector<16x128xf32>
    %cst_83 = arith.constant 9.99999996E-13 : f32
    %228 = vector.broadcast %cst_83 : f32 to vector<16x128xf32>
    %229 = arith.maximumf %227, %228 : vector<16x128xf32>
    %cst_84 = arith.constant 1.000000e+30 : f32
    %230 = vector.broadcast %cst_84 : f32 to vector<16x128xf32>
    %231 = arith.select %127, %229, %230 : vector<16x128xi1>, vector<16x128xf32>
    %cst_85 = arith.constant dense<0x7F800000> : vector<16xf32>
    %232 = vector.multi_reduction <minimumf>, %231, %cst_85 [1] : vector<16x128xf32> to vector<16xf32>
    %233 = vector.shape_cast %232 : vector<16xf32> to vector<16x1xf32>
    %234 = vector.broadcast %233 : vector<16x1xf32> to vector<16x128xf32>
    %235 = arith.cmpf oeq, %231, %234 : vector<16x128xf32>
    %cst_86 = arith.constant 1.280000e+02 : f32
    %236 = vector.broadcast %cst_86 : f32 to vector<16x128xf32>
    %237 = arith.select %235, %23, %236 : vector<16x128xi1>, vector<16x128xf32>
    %cst_87 = arith.constant dense<0x7F800000> : vector<16xf32>
    %238 = vector.multi_reduction <minimumf>, %237, %cst_87 [1] : vector<16x128xf32> to vector<16xf32>
    %239 = vector.shape_cast %238 : vector<16xf32> to vector<16x1xf32>
    %cst_88 = arith.constant 8.000000e+00 : f32
    %240 = vector.broadcast %cst_88 : f32 to vector<16x1xf32>
    %241 = arith.mulf %3, %240 : vector<16x1xf32>
    %242 = arith.subf %239, %241 : vector<16x1xf32>
    %243 = arith.mulf %28, %218 : vector<16x128xf32>
    %cst_89 = arith.constant dense<0.000000e+00> : vector<16xf32>
    %244 = vector.multi_reduction <add>, %243, %cst_89 [1] : vector<16x128xf32> to vector<16xf32>
    %245 = vector.shape_cast %244 : vector<16xf32> to vector<16x1xf32>
    %246 = math.sqrt %221 : vector<16x1xf32>
    %247 = arith.mulf %35, %246 : vector<16x1xf32>
    %cst_90 = arith.constant 9.99999993E-9 : f32
    %248 = vector.broadcast %cst_90 : f32 to vector<16x1xf32>
    %249 = arith.maximumf %247, %248 : vector<16x1xf32>
    %250 = arith.divf %245, %249 : vector<16x1xf32>
    %cst_91 = arith.constant 1.000000e+00 : f32
    %251 = vector.broadcast %cst_91 : f32 to vector<16x128xf32>
    %252 = arith.cmpf oeq, %115, %251 : vector<16x128xf32>
    %253 = vector.shape_cast %213 : vector<16x1xf32> to vector<16x1xf32>
    %254 = vector.broadcast %253 : vector<16x1xf32> to vector<16x128xf32>
    %255 = arith.select %252, %254, %196 : vector<16x128xi1>, vector<16x128xf32>
    %cst_92 = arith.constant 4.000000e+00 : f32
    %256 = vector.broadcast %cst_92 : f32 to vector<16x128xf32>
    %257 = arith.cmpf oeq, %115, %256 : vector<16x128xf32>
    %258 = vector.shape_cast %242 : vector<16x1xf32> to vector<16x1xf32>
    %259 = vector.broadcast %258 : vector<16x1xf32> to vector<16x128xf32>
    %260 = arith.select %257, %259, %255 : vector<16x128xi1>, vector<16x128xf32>
    %cst_93 = arith.constant 7.000000e+00 : f32
    %261 = vector.broadcast %cst_93 : f32 to vector<16x128xf32>
    %262 = arith.cmpf oeq, %115, %261 : vector<16x128xf32>
    %263 = vector.shape_cast %250 : vector<16x1xf32> to vector<16x1xf32>
    %264 = vector.broadcast %263 : vector<16x1xf32> to vector<16x128xf32>
    %265 = arith.select %262, %264, %260 : vector<16x128xi1>, vector<16x128xf32>
    %cst_94 = arith.constant 1.600000e+01 : f32
    %266 = vector.broadcast %cst_94 : f32 to vector<16x128xf32>
    %267 = arith.cmpf oge, %23, %266 : vector<16x128xf32>
    %cst_95 = arith.constant 2.400000e+01 : f32
    %268 = vector.broadcast %cst_95 : f32 to vector<16x128xf32>
    %269 = arith.cmpf olt, %23, %268 : vector<16x128xf32>
    %270 = arith.andi %267, %269 : vector<16x128xi1>
    %cst_96 = arith.constant 1.000000e+30 : f32
    %271 = vector.broadcast %cst_96 : f32 to vector<16x128xf32>
    %272 = arith.select %270, %43, %271 : vector<16x128xi1>, vector<16x128xf32>
    %cst_97 = arith.constant dense<0x7F800000> : vector<16xf32>
    %273 = vector.multi_reduction <minimumf>, %272, %cst_97 [1] : vector<16x128xf32> to vector<16xf32>
    %274 = vector.shape_cast %273 : vector<16xf32> to vector<16x1xf32>
    %275 = vector.broadcast %274 : vector<16x1xf32> to vector<16x128xf32>
    %276 = arith.cmpf oeq, %272, %275 : vector<16x128xf32>
    %cst_98 = arith.constant 1.280000e+02 : f32
    %277 = vector.broadcast %cst_98 : f32 to vector<16x128xf32>
    %278 = arith.select %276, %23, %277 : vector<16x128xi1>, vector<16x128xf32>
    %cst_99 = arith.constant dense<0x7F800000> : vector<16xf32>
    %279 = vector.multi_reduction <minimumf>, %278, %cst_99 [1] : vector<16x128xf32> to vector<16xf32>
    %280 = vector.shape_cast %279 : vector<16xf32> to vector<16x1xf32>
    %cst_100 = arith.constant 1.600000e+01 : f32
    %281 = vector.broadcast %cst_100 : f32 to vector<16x1xf32>
    %282 = arith.subf %280, %281 : vector<16x1xf32>
    %283 = vector.broadcast %280 : vector<16x1xf32> to vector<16x128xf32>
    %284 = arith.cmpf oeq, %23, %283 : vector<16x128xf32>
    %285 = arith.extui %284 : vector<16x128xi1> to vector<16x128xi32>
    %286 = arith.sitofp %285 : vector<16x128xi32> to vector<16x128xf32>
    %cst_101 = arith.constant dense<0.000000e+00> : vector<16x128xf32>
    %287 = tpu.matmul %286, %19, %cst_101 {dimension_numbers = #tpu.dot_dimension_numbers<[1], [0], [0], [1], [0, 0, 1, 1], [], []>} : vector<16x128xf32>, vector<128x128xf32>, vector<16x128xf32> -> vector<16x128xf32>
    %288 = arith.mulf %287, %287 : vector<16x128xf32>
    %cst_102 = arith.constant dense<0.000000e+00> : vector<16xf32>
    %289 = vector.multi_reduction <add>, %288, %cst_102 [1] : vector<16x128xf32> to vector<16xf32>
    %290 = vector.shape_cast %289 : vector<16xf32> to vector<16x1xf32>
    %291 = vector.broadcast %290 : vector<16x1xf32> to vector<16x128xf32>
    %292 = arith.addf %291, %31 : vector<16x128xf32>
    %cst_103 = arith.constant dense<0.000000e+00> : vector<16x128xf32>
    %293 = tpu.matmul %287, %19, %cst_103 {dimension_numbers = #tpu.dot_dimension_numbers<[1], [1], [0], [0], [0, 0, 1, 0], [], []>} : vector<16x128xf32>, vector<128x128xf32>, vector<16x128xf32> -> vector<16x128xf32>
    %cst_104 = arith.constant 2.000000e+00 : f32
    %294 = vector.broadcast %cst_104 : f32 to vector<16x128xf32>
    %295 = arith.mulf %294, %293 : vector<16x128xf32>
    %296 = arith.subf %292, %295 : vector<16x128xf32>
    %cst_105 = arith.constant 9.99999996E-13 : f32
    %297 = vector.broadcast %cst_105 : f32 to vector<16x128xf32>
    %298 = arith.maximumf %296, %297 : vector<16x128xf32>
    %cst_106 = arith.constant 1.000000e+30 : f32
    %299 = vector.broadcast %cst_106 : f32 to vector<16x128xf32>
    %300 = arith.select %127, %298, %299 : vector<16x128xi1>, vector<16x128xf32>
    %cst_107 = arith.constant dense<0x7F800000> : vector<16xf32>
    %301 = vector.multi_reduction <minimumf>, %300, %cst_107 [1] : vector<16x128xf32> to vector<16xf32>
    %302 = vector.shape_cast %301 : vector<16xf32> to vector<16x1xf32>
    %303 = vector.broadcast %302 : vector<16x1xf32> to vector<16x128xf32>
    %304 = arith.cmpf oeq, %300, %303 : vector<16x128xf32>
    %cst_108 = arith.constant 1.280000e+02 : f32
    %305 = vector.broadcast %cst_108 : f32 to vector<16x128xf32>
    %306 = arith.select %304, %23, %305 : vector<16x128xi1>, vector<16x128xf32>
    %cst_109 = arith.constant dense<0x7F800000> : vector<16xf32>
    %307 = vector.multi_reduction <minimumf>, %306, %cst_109 [1] : vector<16x128xf32> to vector<16xf32>
    %308 = vector.shape_cast %307 : vector<16xf32> to vector<16x1xf32>
    %cst_110 = arith.constant 8.000000e+00 : f32
    %309 = vector.broadcast %cst_110 : f32 to vector<16x1xf32>
    %310 = arith.mulf %3, %309 : vector<16x1xf32>
    %311 = arith.subf %308, %310 : vector<16x1xf32>
    %312 = arith.mulf %28, %287 : vector<16x128xf32>
    %cst_111 = arith.constant dense<0.000000e+00> : vector<16xf32>
    %313 = vector.multi_reduction <add>, %312, %cst_111 [1] : vector<16x128xf32> to vector<16xf32>
    %314 = vector.shape_cast %313 : vector<16xf32> to vector<16x1xf32>
    %315 = math.sqrt %290 : vector<16x1xf32>
    %316 = arith.mulf %35, %315 : vector<16x1xf32>
    %cst_112 = arith.constant 9.99999993E-9 : f32
    %317 = vector.broadcast %cst_112 : f32 to vector<16x1xf32>
    %318 = arith.maximumf %316, %317 : vector<16x1xf32>
    %319 = arith.divf %314, %318 : vector<16x1xf32>
    %cst_113 = arith.constant 2.000000e+00 : f32
    %320 = vector.broadcast %cst_113 : f32 to vector<16x128xf32>
    %321 = arith.cmpf oeq, %115, %320 : vector<16x128xf32>
    %322 = vector.shape_cast %282 : vector<16x1xf32> to vector<16x1xf32>
    %323 = vector.broadcast %322 : vector<16x1xf32> to vector<16x128xf32>
    %324 = arith.select %321, %323, %265 : vector<16x128xi1>, vector<16x128xf32>
    %cst_114 = arith.constant 5.000000e+00 : f32
    %325 = vector.broadcast %cst_114 : f32 to vector<16x128xf32>
    %326 = arith.cmpf oeq, %115, %325 : vector<16x128xf32>
    %327 = vector.shape_cast %311 : vector<16x1xf32> to vector<16x1xf32>
    %328 = vector.broadcast %327 : vector<16x1xf32> to vector<16x128xf32>
    %329 = arith.select %326, %328, %324 : vector<16x128xi1>, vector<16x128xf32>
    %cst_115 = arith.constant 8.000000e+00 : f32
    %330 = vector.broadcast %cst_115 : f32 to vector<16x128xf32>
    %331 = arith.cmpf oeq, %115, %330 : vector<16x128xf32>
    %332 = vector.shape_cast %319 : vector<16x1xf32> to vector<16x1xf32>
    %333 = vector.broadcast %332 : vector<16x1xf32> to vector<16x128xf32>
    %334 = arith.select %331, %333, %329 : vector<16x128xi1>, vector<16x128xf32>
    %335 = arith.mulf %35, %35 : vector<16x1xf32>
    %cst_116 = arith.constant 9.99999993E-9 : f32
    %336 = vector.broadcast %cst_116 : f32 to vector<16x1xf32>
    %337 = arith.maximumf %335, %336 : vector<16x1xf32>
    %338 = arith.divf %34, %337 : vector<16x1xf32>
    %cst_117 = arith.constant 9.000000e+00 : f32
    %339 = vector.broadcast %cst_117 : f32 to vector<16x128xf32>
    %340 = arith.cmpf oeq, %115, %339 : vector<16x128xf32>
    %341 = vector.shape_cast %338 : vector<16x1xf32> to vector<16x1xf32>
    %342 = vector.broadcast %341 : vector<16x1xf32> to vector<16x128xf32>
    %343 = arith.select %340, %342, %334 : vector<16x128xi1>, vector<16x128xf32>
    %c0_118 = arith.constant 0 : index
    %c0_119 = arith.constant 0 : index
    %344 = vector.load %arg5[%c0_118, %c0_119] : memref<16x128xf32, #tpu.memory_space<vmem>>, vector<16x128xf32>
    tpu.vector_store %arg5[%c0_118, %c0_119], %343 {strides = array<i32>} : memref<16x128xf32, #tpu.memory_space<vmem>>, vector<16x128xf32>,
    return
  }
  func.func @transform_0(%arg0: i32) -> (i32, i32) {
    %c0_i32 = arith.constant 0 : i32
    %c0_i32_0 = arith.constant 0 : i32
    %c0_i32_1 = arith.constant 0 : i32
    return %c0_i32, %c0_i32_0 : i32, i32
  }
  func.func @transform_1(%arg0: i32) -> (i32, i32) {
    %c0_i32 = arith.constant 0 : i32
    %c0_i32_0 = arith.constant 0 : i32
    %c0_i32_1 = arith.constant 0 : i32
    return %c0_i32, %c0_i32_0 : i32, i32
  }
  func.func @transform_2(%arg0: i32) -> (i32, i32) {
    %c0_i32 = arith.constant 0 : i32
    %c0_i32_0 = arith.constant 0 : i32
    %c0_i32_1 = arith.constant 0 : i32
    return %c0_i32, %c0_i32_0 : i32, i32
  }
  func.func @transform_3(%arg0: i32) -> (i32, i32) {
    %c0_i32 = arith.constant 0 : i32
    %c0_i32_0 = arith.constant 0 : i32
    %c0_i32_1 = arith.constant 0 : i32
    return %c0_i32, %c0_i32_0 : i32, i32
  }
  func.func @transform_4(%arg0: i32) -> (i32, i32) {
    %c0_i32 = arith.constant 0 : i32
    %c0_i32_0 = arith.constant 0 : i32
    %c0_i32_1 = arith.constant 0 : i32
    return %c0_i32, %c0_i32_0 : i32, i32
  }
  func.func @transform_5(%arg0: i32) -> (i32, i32) {
    %c0_i32 = arith.constant 0 : i32
    %c0_i32_0 = arith.constant 0 : i32
    %c0_i32_1 = arith.constant 0 : i32
    return %c0_i32, %c0_i32_0 : i32, i32
  }
  func.func @transform_6(%arg0: i32) -> (i32, i32) {
    %c0_i32 = arith.constant 0 : i32
    %c0_i32_0 = arith.constant 0 : i32
    %c0_i32_1 = arith.constant 0 : i32
    return %c0_i32, %c0_i32_0 : i32, i32
  }
  func.func @transform_7(%arg0: i32) -> (i32, i32) {
    %c0_i32 = arith.constant 0 : i32
    %c0_i32_0 = arith.constant 0 : i32
    %c0_i32_1 = arith.constant 0 : i32
    return %c0_i32, %c0_i32_0 : i32, i32
  }
}

</mosaic_0001>

<llo_original>
// kernel: _run_fused.1
$region0: #{_run_fused.1}
  #allocation0 [shape = 'u32[]', space=smem, size = 0x4, offset = 0x4, fixed_abs, tag = 'smem constant byte address 0x4 - core index']
  #allocation1 [shape = 'u32[72,128]{1,0:T(1,128)}', space=vmem, size = 0x9000, scoped, tag = 'internal scratch']
  %s0 = inlined_call_operand.vmem [shape: f32[16,128], index: 0, kind: input, shape index: {}]
  %s1 = inlined_call_operand.vmem [shape: f32[128,128], index: 1, kind: input, shape index: {}]
  %s2 = inlined_call_operand.vmem [shape: f32[16,1], index: 2, kind: input, shape index: {}]
  %s3 = inlined_call_operand.vmem [shape: f32[16,1], index: 3, kind: input, shape index: {}]
  %s4 = inlined_call_operand.hbm [shape: f32[16,128], index: 4, kind: output, shape index: {0}]
  %s5 = inlined_call_operand.hbm [shape: f32[16,128], index: 5, kind: output, shape index: {1}]
  %s6 = inlined_call_operand.hbm [shape: f32[16,128], index: 6, kind: output, shape index: {2}]
  %s7 = inlined_call_operand.hbm [shape: f32[128,128], index: 7, kind: output, shape index: {3}]
  %8 = xla_tuple %s4, %s5, %s6, %s7
  %s9 = sld [smem:[#allocation0]]
  $region50: #{_run_fused.1} parent=0
    _
  %s11 = ssub.s32 1, %s9
  %s12 = scalar_select 0, %s11, %s9
  $region1: #{_run_fused.1} parent=0
    #allocation2 [shape = 'u8[8192]{0}', space=vmem, size = 0x2000, scoped, tag = 'output window, operand 0, single buffered']
    #allocation3 [shape = 's32[1]{0}', space=sflag, size = 0x4, scoped, tag = 'scoped memory for _run_fused.1']
    #allocation4 [shape = 'u8[8192]{0}', space=vmem, size = 0x2000, scoped, tag = 'output window, operand 1, single buffered']
    #allocation5 [shape = 's32[1]{0}', space=sflag, size = 0x4, scoped, tag = 'scoped memory for _run_fused.1']
    #allocation6 [shape = 'u8[8192]{0}', space=vmem, size = 0x2000, scoped, tag = 'output window, operand 2, single buffered']
    #allocation7 [shape = 'u8[65536]{0}', space=vmem, size = 0x10000, scoped, tag = 'output window, operand 3, single buffered']
    #allocation8 [shape = 's32[1]{0}', space=sflag, size = 0x4, scoped, tag = 'scoped memory for _run_fused.1']
    %13 = vsyncpa [#allocation3], 0
    %14 = vsyncpa [#allocation5], 0
    %15 = vsyncpa [#allocation8], 0
    // Predicated region
    $region2: #{_run_fused.1} parent=1 // pred_check
      _
    $region3: #{_run_fused.1} parent=1 // pred_check_branch
      %17 = sbr.rel (0) target = $region5
    $region4: #{_run_fused.1} parent=1 // pred_region
      _
    $region5: #{_run_fused.1} parent=1 // pred_fallthru
      _
    // Predicated region
    $region6: #{_run_fused.1} parent=1 // pred_check
      _
    $region7: #{_run_fused.1} parent=1 // pred_check_branch
      %19 = sbr.rel (0) target = $region9
    $region8: #{_run_fused.1} parent=1 // pred_region
      _
    $region9: #{_run_fused.1} parent=1 // pred_fallthru
      _
    // Predicated region
    $region10: #{_run_fused.1} parent=1 // pred_check
      _
    $region11: #{_run_fused.1} parent=1 // pred_check_branch
      %21 = sbr.rel (0) target = $region13
    $region12: #{_run_fused.1} parent=1 // pred_region
      _
    $region13: #{_run_fused.1} parent=1 // pred_fallthru
      _
    // Predicated region
    $region14: #{_run_fused.1} parent=1 // pred_check
      _
    $region15: #{_run_fused.1} parent=1 // pred_check_branch
      %23 = sbr.rel (0) target = $region17
    $region16: #{_run_fused.1} parent=1 // pred_region
      _
    $region17: #{_run_fused.1} parent=1 // pred_fallthru
      _
    %v24 = vld [vmem:[%s0] sm:$0xff]
    %v25 = vld [vmem:[%s0 + $0x8] sm:$0xff]
    %v26 = vld [vmem:[%s1] sm:$0xff]
    %v27 = vld [vmem:[%s1 + $0x8] sm:$0xff]
    %v28 = vld [vmem:[%s1 + $0x10] sm:$0xff]
    %v29 = vld [vmem:[%s1 + $0x18] sm:$0xff]
    %v30 = vld [vmem:[%s1 + $0x20] sm:$0xff]
    %v31 = vld [vmem:[%s1 + $0x28] sm:$0xff]
    %v32 = vld [vmem:[%s1 + $0x30] sm:$0xff]
    %v33 = vld [vmem:[%s1 + $0x38] sm:$0xff]
    %v34 = vld [vmem:[%s1 + $0x40] sm:$0xff]
    %v35 = vld [vmem:[%s1 + $0x48] sm:$0xff]
    %v36 = vld [vmem:[%s1 + $0x50] sm:$0xff]
    %v37 = vld [vmem:[%s1 + $0x58] sm:$0xff]
    %v38 = vld [vmem:[%s1 + $0x60] sm:$0xff]
    %v39 = vld [vmem:[%s1 + $0x68] sm:$0xff]
    %v40 = vld [vmem:[%s1 + $0x70] sm:$0xff]
    %v41 = vld [vmem:[%s1 + $0x78] sm:$0xff]
    %v42 = vld [vmem:[%s2] sm:$0xff]
    %v43 = vld [vmem:[%s2 + $0x8] sm:$0xff]
    %v44 = vld [vmem:[%s3] sm:$0xff]
    %v45 = vld [vmem:[%s3 + $0x8] sm:$0xff]
    %v46 = vmul.f32 %v24, %v24
    %v47 = vmul.f32 %v25, %v25
    %48 = vadd.xlane.f32.xlu0 %v46
    %v49 = vpop.xlane.xlu0 %48
    %50 = vadd.xlane.f32.xlu0 %v47
    %v51 = vpop.xlane.xlu0 %50
    %v52 = vrsqrt.pop %v49
    %v53 = vmul.f32 %v52, %v49
    %v54 = vmul.f32 %v53, %v52
    %v55 = vmul.f32 0.5, %v54
    %v56 = vsub.f32 1.5, %v55
    %v57 = vmul.f32 %v52, %v56
    %v58 = vmul.f32 %v49, %v57
    %vm59 = vcmp.eq.f32.partialorder %v49, inf
    %v60 = vsel %vm59, %v49, %v58
    %vm61 = vcmp.eq.f32.partialorder %v49, 0.0
    %v62 = vand.u32 %v49, 2147483648
    %v63 = vsel %vm61, %v62, %v60
    %v64 = vrsqrt.pop %v51
    %v65 = vmul.f32 %v64, %v51
    %v66 = vmul.f32 %v65, %v64
    %v67 = vmul.f32 0.5, %v66
    %v68 = vsub.f32 1.5, %v67
    %v69 = vmul.f32 %v64, %v68
    %v70 = vmul.f32 %v51, %v69
    %vm71 = vcmp.eq.f32.partialorder %v51, inf
    %v72 = vsel %vm71, %v51, %v70
    %vm73 = vcmp.eq.f32.partialorder %v51, 0.0
    %v74 = vand.u32 %v51, 2147483648
    %v75 = vsel %vm73, %v74, %v72
    %v76 = vadd.f32 %v63, 1e-12
    %v77 = vadd.f32 %v75, 1e-12
    %v78 = vrcp.pop %v76
    %v79 = vmul.f32 %v76, %v78
    %v80 = vsub.f32 1.0, %v79
    %v81 = vmul.f32 %v78, %v80
    %v82 = vadd.f32 %v78, %v81
    %vm83 = vweird.f32 %v76
    %vm84 = vweird.f32 %v78
    %vm85 = vmor %vm83, %vm84
    %v86 = vsel %vm85, %v78, %v82
    %v87 = vand.u32 2147483647, %v76
    %vm88 = vcmp.eq.f32.partialorder %v87, 8.507059e+37
    %v89 = vand.u32 %v76, 2147483648
    %v90 = vor.u32 1.1754944e-38, %v89
    %v91 = vsel %vm88, %v90, %v86
    %v92 = vmul.f32 %v24, %v91
    %v93 = vrcp.pop %v77
    %v94 = vmul.f32 %v77, %v93
    %v95 = vsub.f32 1.0, %v94
    %v96 = vmul.f32 %v93, %v95
    %v97 = vadd.f32 %v93, %v96
    %vm98 = vweird.f32 %v77
    %vm99 = vweird.f32 %v93
    %vm100 = vmor %vm98, %vm99
    %v101 = vsel %vm100, %v93, %v97
    %v102 = vand.u32 2147483647, %v77
    %vm103 = vcmp.eq.f32.partialorder %v102, 8.507059e+37
    %v104 = vand.u32 %v77, 2147483648
    %v105 = vor.u32 1.1754944e-38, %v104
    %v106 = vsel %vm103, %v105, %v101
    %v107 = vmul.f32 %v25, %v106
    %v108 = vmul.f32 %v26, %v26
    %v109 = vmul.f32 %v27, %v27
    %v110 = vmul.f32 %v28, %v28
    %v111 = vmul.f32 %v29, %v29
    %v112 = vmul.f32 %v30, %v30
    %v113 = vmul.f32 %v31, %v31
    %v114 = vmul.f32 %v32, %v32
    %v115 = vmul.f32 %v33, %v33
    %v116 = vmul.f32 %v34, %v34
    %v117 = vmul.f32 %v35, %v35
    %v118 = vmul.f32 %v36, %v36
    %v119 = vmul.f32 %v37, %v37
    %v120 = vmul.f32 %v38, %v38
    %v121 = vmul.f32 %v39, %v39
    %v122 = vmul.f32 %v40, %v40
    %v123 = vmul.f32 %v41, %v41
    %124 = vadd.xlane.f32.xlu0 %v108
    %v125 = vpop.xlane.xlu0 %124
    %126 = vadd.xlane.f32.xlu0 %v109
    %v127 = vpop.xlane.xlu0 %126
    %128 = vadd.xlane.f32.xlu0 %v110
    %v129 = vpop.xlane.xlu0 %128
    %130 = vadd.xlane.f32.xlu0 %v111
    %v131 = vpop.xlane.xlu0 %130
    %132 = vadd.xlane.f32.xlu0 %v112
    %v133 = vpop.xlane.xlu0 %132
    %134 = vadd.xlane.f32.xlu0 %v113
    %v135 = vpop.xlane.xlu0 %134
    %136 = vadd.xlane.f32.xlu0 %v114
    %v137 = vpop.xlane.xlu0 %136
    %138 = vadd.xlane.f32.xlu0 %v115
    %v139 = vpop.xlane.xlu0 %138
    %140 = vadd.xlane.f32.xlu0 %v116
    %v141 = vpop.xlane.xlu0 %140
    %142 = vadd.xlane.f32.xlu0 %v117
    %v143 = vpop.xlane.xlu0 %142
    %144 = vadd.xlane.f32.xlu0 %v118
    %v145 = vpop.xlane.xlu0 %144
    %146 = vadd.xlane.f32.xlu0 %v119
    %v147 = vpop.xlane.xlu0 %146
    %148 = vadd.xlane.f32.xlu0 %v120
    %v149 = vpop.xlane.xlu0 %148
    %150 = vadd.xlane.f32.xlu0 %v121
    %v151 = vpop.xlane.xlu0 %150
    %152 = vadd.xlane.f32.xlu0 %v122
    %v153 = vpop.xlane.xlu0 %152
    %154 = vadd.xlane.f32.xlu0 %v123
    %v155 = vpop.xlane.xlu0 %154
    %v156 = vrsqrt.pop %v125
    %v157 = vmul.f32 %v156, %v125
    %v158 = vmul.f32 %v157, %v156
    %v159 = vmul.f32 0.5, %v158
    %v160 = vsub.f32 1.5, %v159
    %v161 = vmul.f32 %v156, %v160
    %v162 = vmul.f32 %v125, %v161
    %vm163 = vcmp.eq.f32.partialorder %v125, inf
    %v164 = vsel %vm163, %v125, %v162
    %vm165 = vcmp.eq.f32.partialorder %v125, 0.0
    %v166 = vand.u32 %v125, 2147483648
    %v167 = vsel %vm165, %v166, %v164
    %v168 = vrsqrt.pop %v127
    %v169 = vmul.f32 %v168, %v127
    %v170 = vmul.f32 %v169, %v168
    %v171 = vmul.f32 0.5, %v170
    %v172 = vsub.f32 1.5, %v171
    %v173 = vmul.f32 %v168, %v172
    %v174 = vmul.f32 %v127, %v173
    %vm175 = vcmp.eq.f32.partialorder %v127, inf
    %v176 = vsel %vm175, %v127, %v174
    %vm177 = vcmp.eq.f32.partialorder %v127, 0.0
    %v178 = vand.u32 %v127, 2147483648
    %v179 = vsel %vm177, %v178, %v176
    %v180 = vrsqrt.pop %v129
    %v181 = vmul.f32 %v180, %v129
    %v182 = vmul.f32 %v181, %v180
    %v183 = vmul.f32 0.5, %v182
    %v184 = vsub.f32 1.5, %v183
    %v185 = vmul.f32 %v180, %v184
    %v186 = vmul.f32 %v129, %v185
    %vm187 = vcmp.eq.f32.partialorder %v129, inf
    %v188 = vsel %vm187, %v129, %v186
    %vm189 = vcmp.eq.f32.partialorder %v129, 0.0
    %v190 = vand.u32 %v129, 2147483648
    %v191 = vsel %vm189, %v190, %v188
    %v192 = vrsqrt.pop %v131
    %v193 = vmul.f32 %v192, %v131
    %v194 = vmul.f32 %v193, %v192
    %v195 = vmul.f32 0.5, %v194
    %v196 = vsub.f32 1.5, %v195
    %v197 = vmul.f32 %v192, %v196
    %v198 = vmul.f32 %v131, %v197
    %vm199 = vcmp.eq.f32.partialorder %v131, inf
    %v200 = vsel %vm199, %v131, %v198
    %vm201 = vcmp.eq.f32.partialorder %v131, 0.0
    %v202 = vand.u32 %v131, 2147483648
    %v203 = vsel %vm201, %v202, %v200
    %v204 = vrsqrt.pop %v133
    %v205 = vmul.f32 %v204, %v133
    %v206 = vmul.f32 %v205, %v204
    %v207 = vmul.f32 0.5, %v206
    %v208 = vsub.f32 1.5, %v207
    %v209 = vmul.f32 %v204, %v208
    %v210 = vmul.f32 %v133, %v209
    %vm211 = vcmp.eq.f32.partialorder %v133, inf
    %v212 = vsel %vm211, %v133, %v210
    %vm213 = vcmp.eq.f32.partialorder %v133, 0.0
    %v214 = vand.u32 %v133, 2147483648
    %v215 = vsel %vm213, %v214, %v212
    %v216 = vrsqrt.pop %v135
    %v217 = vmul.f32 %v216, %v135
    %v218 = vmul.f32 %v217, %v216
    %v219 = vmul.f32 0.5, %v218
    %v220 = vsub.f32 1.5, %v219
    %v221 = vmul.f32 %v216, %v220
    %v222 = vmul.f32 %v135, %v221
    %vm223 = vcmp.eq.f32.partialorder %v135, inf
    %v224 = vsel %vm223, %v135, %v222
    %vm225 = vcmp.eq.f32.partialorder %v135, 0.0
    %v226 = vand.u32 %v135, 2147483648
    %v227 = vsel %vm225, %v226, %v224
    %v228 = vrsqrt.pop %v137
    %v229 = vmul.f32 %v228, %v137
    %v230 = vmul.f32 %v229, %v228
    %v231 = vmul.f32 0.5, %v230
    %v232 = vsub.f32 1.5, %v231
    %v233 = vmul.f32 %v228, %v232
    %v234 = vmul.f32 %v137, %v233
    %vm235 = vcmp.eq.f32.partialorder %v137, inf
    %v236 = vsel %vm235, %v137, %v234
    %vm237 = vcmp.eq.f32.partialorder %v137, 0.0
    %v238 = vand.u32 %v137, 2147483648
    %v239 = vsel %vm237, %v238, %v236
    %v240 = vrsqrt.pop %v139
    %v241 = vmul.f32 %v240, %v139
    %v242 = vmul.f32 %v241, %v240
    %v243 = vmul.f32 0.5, %v242
    %v244 = vsub.f32 1.5, %v243
    %v245 = vmul.f32 %v240, %v244
    %v246 = vmul.f32 %v139, %v245
    %vm247 = vcmp.eq.f32.partialorder %v139, inf
    %v248 = vsel %vm247, %v139, %v246
    %vm249 = vcmp.eq.f32.partialorder %v139, 0.0
    %v250 = vand.u32 %v139, 2147483648
    %v251 = vsel %vm249, %v250, %v248
    %v252 = vrsqrt.pop %v141
    %v253 = vmul.f32 %v252, %v141
    %v254 = vmul.f32 %v253, %v252
    %v255 = vmul.f32 0.5, %v254
    %v256 = vsub.f32 1.5, %v255
    %v257 = vmul.f32 %v252, %v256
    %v258 = vmul.f32 %v141, %v257
    %vm259 = vcmp.eq.f32.partialorder %v141, inf
    %v260 = vsel %vm259, %v141, %v258
    %vm261 = vcmp.eq.f32.partialorder %v141, 0.0
    %v262 = vand.u32 %v141, 2147483648
    %v263 = vsel %vm261, %v262, %v260
    %v264 = vrsqrt.pop %v143
    %v265 = vmul.f32 %v264, %v143
    %v266 = vmul.f32 %v265, %v264
    %v267 = vmul.f32 0.5, %v266
    %v268 = vsub.f32 1.5, %v267
    %v269 = vmul.f32 %v264, %v268
    %v270 = vmul.f32 %v143, %v269
    %vm271 = vcmp.eq.f32.partialorder %v143, inf
    %v272 = vsel %vm271, %v143, %v270
    %vm273 = vcmp.eq.f32.partialorder %v143, 0.0
    %v274 = vand.u32 %v143, 2147483648
    %v275 = vsel %vm273, %v274, %v272
    %v276 = vrsqrt.pop %v145
    %v277 = vmul.f32 %v276, %v145
    %v278 = vmul.f32 %v277, %v276
    %v279 = vmul.f32 0.5, %v278
    %v280 = vsub.f32 1.5, %v279
    %v281 = vmul.f32 %v276, %v280
    %v282 = vmul.f32 %v145, %v281
    %vm283 = vcmp.eq.f32.partialorder %v145, inf
    %v284 = vsel %vm283, %v145, %v282
    %vm285 = vcmp.eq.f32.partialorder %v145, 0.0
    %v286 = vand.u32 %v145, 2147483648
    %v287 = vsel %vm285, %v286, %v284
    %v288 = vrsqrt.pop %v147
    %v289 = vmul.f32 %v288, %v147
    %v290 = vmul.f32 %v289, %v288
    %v291 = vmul.f32 0.5, %v290
    %v292 = vsub.f32 1.5, %v291
    %v293 = vmul.f32 %v288, %v292
    %v294 = vmul.f32 %v147, %v293
    %vm295 = vcmp.eq.f32.partialorder %v147, inf
    %v296 = vsel %vm295, %v147, %v294
    %vm297 = vcmp.eq.f32.partialorder %v147, 0.0
    %v298 = vand.u32 %v147, 2147483648
    %v299 = vsel %vm297, %v298, %v296
    %v300 = vrsqrt.pop %v149
    %v301 = vmul.f32 %v300, %v149
    %v302 = vmul.f32 %v301, %v300
    %v303 = vmul.f32 0.5, %v302
    %v304 = vsub.f32 1.5, %v303
    %v305 = vmul.f32 %v300, %v304
    %v306 = vmul.f32 %v149, %v305
    %vm307 = vcmp.eq.f32.partialorder %v149, inf
    %v308 = vsel %vm307, %v149, %v306
    %vm309 = vcmp.eq.f32.partialorder %v149, 0.0
    %v310 = vand.u32 %v149, 2147483648
    %v311 = vsel %vm309, %v310, %v308
    %v312 = vrsqrt.pop %v151
    %v313 = vmul.f32 %v312, %v151
    %v314 = vmul.f32 %v313, %v312
    %v315 = vmul.f32 0.5, %v314
    %v316 = vsub.f32 1.5, %v315
    %v317 = vmul.f32 %v312, %v316
    %v318 = vmul.f32 %v151, %v317
    %vm319 = vcmp.eq.f32.partialorder %v151, inf
    %v320 = vsel %vm319, %v151, %v318
    %vm321 = vcmp.eq.f32.partialorder %v151, 0.0
    %v322 = vand.u32 %v151, 2147483648
    %v323 = vsel %vm321, %v322, %v320
    %v324 = vrsqrt.pop %v153
    %v325 = vmul.f32 %v324, %v153
    %v326 = vmul.f32 %v325, %v324
    %v327 = vmul.f32 0.5, %v326
    %v328 = vsub.f32 1.5, %v327
    %v329 = vmul.f32 %v324, %v328
    %v330 = vmul.f32 %v153, %v329
    %vm331 = vcmp.eq.f32.partialorder %v153, inf
    %v332 = vsel %vm331, %v153, %v330
    %vm333 = vcmp.eq.f32.partialorder %v153, 0.0
    %v334 = vand.u32 %v153, 2147483648
    %v335 = vsel %vm333, %v334, %v332
    %v336 = vrsqrt.pop %v155
    %v337 = vmul.f32 %v336, %v155
    %v338 = vmul.f32 %v337, %v336
    %v339 = vmul.f32 0.5, %v338
    %v340 = vsub.f32 1.5, %v339
    %v341 = vmul.f32 %v336, %v340
    %v342 = vmul.f32 %v155, %v341
    %vm343 = vcmp.eq.f32.partialorder %v155, inf
    %v344 = vsel %vm343, %v155, %v342
    %vm345 = vcmp.eq.f32.partialorder %v155, 0.0
    %v346 = vand.u32 %v155, 2147483648
    %v347 = vsel %vm345, %v346, %v344
    %v348 = vadd.f32 %v167, 1e-12
    %v349 = vadd.f32 %v179, 1e-12
    %v350 = vadd.f32 %v191, 1e-12
    %v351 = vadd.f32 %v203, 1e-12
    %v352 = vadd.f32 %v215, 1e-12
    %v353 = vadd.f32 %v227, 1e-12
    %v354 = vadd.f32 %v239, 1e-12
    %v355 = vadd.f32 %v251, 1e-12
    %v356 = vadd.f32 %v263, 1e-12
    %v357 = vadd.f32 %v275, 1e-12
    %v358 = vadd.f32 %v287, 1e-12
    %v359 = vadd.f32 %v299, 1e-12
    %v360 = vadd.f32 %v311, 1e-12
    %v361 = vadd.f32 %v323, 1e-12
    %v362 = vadd.f32 %v335, 1e-12
    %v363 = vadd.f32 %v347, 1e-12
    %v364 = vrcp.pop %v348
    %v365 = vmul.f32 %v348, %v364
    %v366 = vsub.f32 1.0, %v365
    %v367 = vmul.f32 %v364, %v366
    %v368 = vadd.f32 %v364, %v367
    %vm369 = vweird.f32 %v348
    %vm370 = vweird.f32 %v364
    %vm371 = vmor %vm369, %vm370
    %v372 = vsel %vm371, %v364, %v368
    %v373 = vand.u32 2147483647, %v348
    %vm374 = vcmp.eq.f32.partialorder %v373, 8.507059e+37
    %v375 = vand.u32 %v348, 2147483648
    %v376 = vor.u32 1.1754944e-38, %v375
    %v377 = vsel %vm374, %v376, %v372
    %v378 = vmul.f32 %v26, %v377
    %v379 = vrcp.pop %v349
    %v380 = vmul.f32 %v349, %v379
    %v381 = vsub.f32 1.0, %v380
    %v382 = vmul.f32 %v379, %v381
    %v383 = vadd.f32 %v379, %v382
    %vm384 = vweird.f32 %v349
    %vm385 = vweird.f32 %v379
    %vm386 = vmor %vm384, %vm385
    %v387 = vsel %vm386, %v379, %v383
    %v388 = vand.u32 2147483647, %v349
    %vm389 = vcmp.eq.f32.partialorder %v388, 8.507059e+37
    %v390 = vand.u32 %v349, 2147483648
    %v391 = vor.u32 1.1754944e-38, %v390
    %v392 = vsel %vm389, %v391, %v387
    %v393 = vmul.f32 %v27, %v392
    %v394 = vrcp.pop %v350
    %v395 = vmul.f32 %v350, %v394
    %v396 = vsub.f32 1.0, %v395
    %v397 = vmul.f32 %v394, %v396
    %v398 = vadd.f32 %v394, %v397
    %vm399 = vweird.f32 %v350
    %vm400 = vweird.f32 %v394
    %vm401 = vmor %vm399, %vm400
    %v402 = vsel %vm401, %v394, %v398
    %v403 = vand.u32 2147483647, %v350
    %vm404 = vcmp.eq.f32.partialorder %v403, 8.507059e+37
    %v405 = vand.u32 %v350, 2147483648
    %v406 = vor.u32 1.1754944e-38, %v405
    %v407 = vsel %vm404, %v406, %v402
    %v408 = vmul.f32 %v28, %v407
    %v409 = vrcp.pop %v351
    %v410 = vmul.f32 %v351, %v409
    %v411 = vsub.f32 1.0, %v410
    %v412 = vmul.f32 %v409, %v411
    %v413 = vadd.f32 %v409, %v412
    %vm414 = vweird.f32 %v351
    %vm415 = vweird.f32 %v409
    %vm416 = vmor %vm414, %vm415
    %v417 = vsel %vm416, %v409, %v413
    %v418 = vand.u32 2147483647, %v351
    %vm419 = vcmp.eq.f32.partialorder %v418, 8.507059e+37
    %v420 = vand.u32 %v351, 2147483648
    %v421 = vor.u32 1.1754944e-38, %v420
    %v422 = vsel %vm419, %v421, %v417
    %v423 = vmul.f32 %v29, %v422
    %v424 = vrcp.pop %v352
    %v425 = vmul.f32 %v352, %v424
    %v426 = vsub.f32 1.0, %v425
    %v427 = vmul.f32 %v424, %v426
    %v428 = vadd.f32 %v424, %v427
    %vm429 = vweird.f32 %v352
    %vm430 = vweird.f32 %v424
    %vm431 = vmor %vm429, %vm430
    %v432 = vsel %vm431, %v424, %v428
    %v433 = vand.u32 2147483647, %v352
    %vm434 = vcmp.eq.f32.partialorder %v433, 8.507059e+37
    %v435 = vand.u32 %v352, 2147483648
    %v436 = vor.u32 1.1754944e-38, %v435
    %v437 = vsel %vm434, %v436, %v432
    %v438 = vmul.f32 %v30, %v437
    %v439 = vrcp.pop %v353
    %v440 = vmul.f32 %v353, %v439
    %v441 = vsub.f32 1.0, %v440
    %v442 = vmul.f32 %v439, %v441
    %v443 = vadd.f32 %v439, %v442
    %vm444 = vweird.f32 %v353
    %vm445 = vweird.f32 %v439
    %vm446 = vmor %vm444, %vm445
    %v447 = vsel %vm446, %v439, %v443
    %v448 = vand.u32 2147483647, %v353
    %vm449 = vcmp.eq.f32.partialorder %v448, 8.507059e+37
    %v450 = vand.u32 %v353, 2147483648
    %v451 = vor.u32 1.1754944e-38, %v450
    %v452 = vsel %vm449, %v451, %v447
    %v453 = vmul.f32 %v31, %v452
    %v454 = vrcp.pop %v354
    %v455 = vmul.f32 %v354, %v454
    %v456 = vsub.f32 1.0, %v455
    %v457 = vmul.f32 %v454, %v456
    %v458 = vadd.f32 %v454, %v457
    %vm459 = vweird.f32 %v354
    %vm460 = vweird.f32 %v454
    %vm461 = vmor %vm459, %vm460
    %v462 = vsel %vm461, %v454, %v458
    %v463 = vand.u32 2147483647, %v354
    %vm464 = vcmp.eq.f32.partialorder %v463, 8.507059e+37
    %v465 = vand.u32 %v354, 2147483648
    %v466 = vor.u32 1.1754944e-38, %v465
    %v467 = vsel %vm464, %v466, %v462
    %v468 = vmul.f32 %v32, %v467
    %v469 = vrcp.pop %v355
    %v470 = vmul.f32 %v355, %v469
    %v471 = vsub.f32 1.0, %v470
    %v472 = vmul.f32 %v469, %v471
    %v473 = vadd.f32 %v469, %v472
    %vm474 = vweird.f32 %v355
    %vm475 = vweird.f32 %v469
    %vm476 = vmor %vm474, %vm475
    %v477 = vsel %vm476, %v469, %v473
    %v478 = vand.u32 2147483647, %v355
    %vm479 = vcmp.eq.f32.partialorder %v478, 8.507059e+37
    %v480 = vand.u32 %v355, 2147483648
    %v481 = vor.u32 1.1754944e-38, %v480
    %v482 = vsel %vm479, %v481, %v477
    %v483 = vmul.f32 %v33, %v482
    %v484 = vrcp.pop %v356
    %v485 = vmul.f32 %v356, %v484
    %v486 = vsub.f32 1.0, %v485
    %v487 = vmul.f32 %v484, %v486
    %v488 = vadd.f32 %v484, %v487
    %vm489 = vweird.f32 %v356
    %vm490 = vweird.f32 %v484
    %vm491 = vmor %vm489, %vm490
    %v492 = vsel %vm491, %v484, %v488
    %v493 = vand.u32 2147483647, %v356
    %vm494 = vcmp.eq.f32.partialorder %v493, 8.507059e+37
    %v495 = vand.u32 %v356, 2147483648
    %v496 = vor.u32 1.1754944e-38, %v495
    %v497 = vsel %vm494, %v496, %v492
    %v498 = vmul.f32 %v34, %v497
    %v499 = vrcp.pop %v357
    %v500 = vmul.f32 %v357, %v499
    %v501 = vsub.f32 1.0, %v500
    %v502 = vmul.f32 %v499, %v501
    %v503 = vadd.f32 %v499, %v502
    %vm504 = vweird.f32 %v357
    %vm505 = vweird.f32 %v499
    %vm506 = vmor %vm504, %vm505
    %v507 = vsel %vm506, %v499, %v503
    %v508 = vand.u32 2147483647, %v357
    %vm509 = vcmp.eq.f32.partialorder %v508, 8.507059e+37
    %v510 = vand.u32 %v357, 2147483648
    %v511 = vor.u32 1.1754944e-38, %v510
    %v512 = vsel %vm509, %v511, %v507
    %v513 = vmul.f32 %v35, %v512
    %v514 = vrcp.pop %v358
    %v515 = vmul.f32 %v358, %v514
    %v516 = vsub.f32 1.0, %v515
    %v517 = vmul.f32 %v514, %v516
    %v518 = vadd.f32 %v514, %v517
    %vm519 = vweird.f32 %v358
    %vm520 = vweird.f32 %v514
    %vm521 = vmor %vm519, %vm520
    %v522 = vsel %vm521, %v514, %v518
    %v523 = vand.u32 2147483647, %v358
    %vm524 = vcmp.eq.f32.partialorder %v523, 8.507059e+37
    %v525 = vand.u32 %v358, 2147483648
    %v526 = vor.u32 1.1754944e-38, %v525
    %v527 = vsel %vm524, %v526, %v522
    %v528 = vmul.f32 %v36, %v527
    %v529 = vrcp.pop %v359
    %v530 = vmul.f32 %v359, %v529
    %v531 = vsub.f32 1.0, %v530
    %v532 = vmul.f32 %v529, %v531
    %v533 = vadd.f32 %v529, %v532
    %vm534 = vweird.f32 %v359
    %vm535 = vweird.f32 %v529
    %vm536 = vmor %vm534, %vm535
    %v537 = vsel %vm536, %v529, %v533
    %v538 = vand.u32 2147483647, %v359
    %vm539 = vcmp.eq.f32.partialorder %v538, 8.507059e+37
    %v540 = vand.u32 %v359, 2147483648
    %v541 = vor.u32 1.1754944e-38, %v540
    %v542 = vsel %vm539, %v541, %v537
    %v543 = vmul.f32 %v37, %v542
    %v544 = vrcp.pop %v360
    %v545 = vmul.f32 %v360, %v544
    %v546 = vsub.f32 1.0, %v545
    %v547 = vmul.f32 %v544, %v546
    %v548 = vadd.f32 %v544, %v547
    %vm549 = vweird.f32 %v360
    %vm550 = vweird.f32 %v544
    %vm551 = vmor %vm549, %vm550
    %v552 = vsel %vm551, %v544, %v548
    %v553 = vand.u32 2147483647, %v360
    %vm554 = vcmp.eq.f32.partialorder %v553, 8.507059e+37
    %v555 = vand.u32 %v360, 2147483648
    %v556 = vor.u32 1.1754944e-38, %v555
    %v557 = vsel %vm554, %v556, %v552
    %v558 = vmul.f32 %v38, %v557
    %v559 = vrcp.pop %v361
    %v560 = vmul.f32 %v361, %v559
    %v561 = vsub.f32 1.0, %v560
    %v562 = vmul.f32 %v559, %v561
    %v563 = vadd.f32 %v559, %v562
    %vm564 = vweird.f32 %v361
    %vm565 = vweird.f32 %v559
    %vm566 = vmor %vm564, %vm565
    %v567 = vsel %vm566, %v559, %v563
    %v568 = vand.u32 2147483647, %v361
    %vm569 = vcmp.eq.f32.partialorder %v568, 8.507059e+37
    %v570 = vand.u32 %v361, 2147483648
    %v571 = vor.u32 1.1754944e-38, %v570
    %v572 = vsel %vm569, %v571, %v567
    %v573 = vmul.f32 %v39, %v572
    %v574 = vrcp.pop %v362
    %v575 = vmul.f32 %v362, %v574
    %v576 = vsub.f32 1.0, %v575
    %v577 = vmul.f32 %v574, %v576
    %v578 = vadd.f32 %v574, %v577
    %vm579 = vweird.f32 %v362
    %vm580 = vweird.f32 %v574
    %vm581 = vmor %vm579, %vm580
    %v582 = vsel %vm581, %v574, %v578
    %v583 = vand.u32 2147483647, %v362
    %vm584 = vcmp.eq.f32.partialorder %v583, 8.507059e+37
    %v585 = vand.u32 %v362, 2147483648
    %v586 = vor.u32 1.1754944e-38, %v585
    %v587 = vsel %vm584, %v586, %v582
    %v588 = vmul.f32 %v40, %v587
    %v589 = vrcp.pop %v363
    %v590 = vmul.f32 %v363, %v589
    %v591 = vsub.f32 1.0, %v590
    %v592 = vmul.f32 %v589, %v591
    %v593 = vadd.f32 %v589, %v592
    %vm594 = vweird.f32 %v363
    %vm595 = vweird.f32 %v589
    %vm596 = vmor %vm594, %vm595
    %v597 = vsel %vm596, %v589, %v593
    %v598 = vand.u32 2147483647, %v363
    %vm599 = vcmp.eq.f32.partialorder %v598, 8.507059e+37
    %v600 = vand.u32 %v363, 2147483648
    %v601 = vor.u32 1.1754944e-38, %v600
    %v602 = vsel %vm599, %v601, %v597
    %v603 = vmul.f32 %v41, %v602
    %604 = vst [vmem:[#allocation6] sm:$0xff] %v92
    %605 = vst [vmem:[#allocation6 + $0x8] sm:$0xff] %v107
    %606 = vst [vmem:[#allocation7] sm:$0xff] %v378
    %607 = vst [vmem:[#allocation7 + $0x8] sm:$0xff] %v393
    %608 = vst [vmem:[#allocation7 + $0x10] sm:$0xff] %v408
    %609 = vst [vmem:[#allocation7 + $0x18] sm:$0xff] %v423
    %610 = vst [vmem:[#allocation7 + $0x20] sm:$0xff] %v438
    %611 = vst [vmem:[#allocation7 + $0x28] sm:$0xff] %v453
    %612 = vst [vmem:[#allocation7 + $0x30] sm:$0xff] %v468
    %613 = vst [vmem:[#allocation7 + $0x38] sm:$0xff] %v483
    %614 = vst [vmem:[#allocation7 + $0x40] sm:$0xff] %v498
    %615 = vst [vmem:[#allocation7 + $0x48] sm:$0xff] %v513
    %616 = vst [vmem:[#allocation7 + $0x50] sm:$0xff] %v528
    %617 = vst [vmem:[#allocation7 + $0x58] sm:$0xff] %v543
    %618 = vst [vmem:[#allocation7 + $0x60] sm:$0xff] %v558
    %619 = vst [vmem:[#allocation7 + $0x68] sm:$0xff] %v573
    %620 = vst [vmem:[#allocation7 + $0x70] sm:$0xff] %v588
    %621 = vst [vmem:[#allocation7 + $0x78] sm:$0xff] %v603
    %v622 = vlaneseq
    %v623 = vand.u32 %v622, 127
    %v624 = vcvt.s32.f32 %v623
    %626 = vset.pattern.permute.xlu0 0
    %627 = vperm.xlu0 %626, %v42
    %v628 = vpop.permute.xlu0 %627
    %631 = vset.pattern.permute.xlu0 0
    %632 = vperm.xlu0 %631, %v43
    %v633 = vpop.permute.xlu0 %632
    %vm635 = vcmp.eq.f32.partialorder %v624, %v628
    %vm636 = vcmp.eq.f32.partialorder %v624, %v633
    %v637 = vsel %vm635, 1, 0
    %v638 = vsel %vm636, 1, 0
    %v639 = vcvt.s32.f32 %v637
    %v640 = vcvt.s32.f32 %v638
    %641 = vmatpush.msra.mxu0 %v603
    %642 = vmatpush.msra.mxu0 %v588
    %643 = vmatpush.msra.mxu0 %v573
    %644 = vmatpush.msra.mxu0 %v558
    %645 = vmatpush.msra.mxu0 %v543
    %646 = vmatpush.msra.mxu0 %v528
    %647 = vmatpush.msra.mxu0 %v513
    %648 = vmatpush.msra.mxu0 %v498
    %649 = vmatpush.msra.mxu0 %v483
    %650 = vmatpush.msra.mxu0 %v468
    %651 = vmatpush.msra.mxu0 %v453
    %652 = vmatpush.msra.mxu0 %v438
    %653 = vmatpush.msra.mxu0 %v423
    %654 = vmatpush.msra.mxu0 %v408
    %655 = vmatpush.msra.mxu0 %v393
    %656 = vmatpush.msra.mxu0 %v378
    %657 = vmatmul.f32.gmra.mxu0 %v639
    %v658 = vpop.f32.mrf.mxu0
    %v659 = vadd.f32 0.0, %v658
    %660 = vmatmul.f32.gmra.mxu0 %v640
    %v661 = vpop.f32.mrf.mxu0
    %v662 = vadd.f32 0.0, %v661
    %663 = vdwg.mxu0
    %v664 = vmul.f32 %v378, %v378
    %v665 = vmul.f32 %v393, %v393
    %v666 = vmul.f32 %v408, %v408
    %v667 = vmul.f32 %v423, %v423
    %v668 = vmul.f32 %v438, %v438
    %v669 = vmul.f32 %v453, %v453
    %v670 = vmul.f32 %v468, %v468
    %v671 = vmul.f32 %v483, %v483
    %v672 = vmul.f32 %v498, %v498
    %v673 = vmul.f32 %v513, %v513
    %v674 = vmul.f32 %v528, %v528
    %v675 = vmul.f32 %v543, %v543
    %v676 = vmul.f32 %v558, %v558
    %v677 = vmul.f32 %v573, %v573
    %v678 = vmul.f32 %v588, %v588
    %v679 = vmul.f32 %v603, %v603
    %680 = vmatpush.xpose.msra.mxu0 %v679
    %681 = vmatpush.xpose.msra.mxu0 %v678
    %682 = vmatpush.xpose.msra.mxu0 %v677
    %683 = vmatpush.xpose.msra.mxu0 %v676
    %684 = vmatpush.xpose.msra.mxu0 %v675
    %685 = vmatpush.xpose.msra.mxu0 %v674
    %686 = vmatpush.xpose.msra.mxu0 %v673
    %687 = vmatpush.xpose.msra.mxu0 %v672
    %688 = vmatpush.xpose.msra.mxu0 %v671
    %689 = vmatpush.xpose.msra.mxu0 %v670
    %690 = vmatpush.xpose.msra.mxu0 %v669
    %691 = vmatpush.xpose.msra.mxu0 %v668
    %692 = vmatpush.xpose.msra.mxu0 %v667
    %693 = vmatpush.xpose.msra.mxu0 %v666
    %694 = vmatpush.xpose.msra.mxu0 %v665
    %695 = vmatpush.xpose.msra.mxu0 %v664
    %696 = vmatmul.f32.gmra.mxu0 1.0
    %v697 = vpop.f32.mrf.mxu0
    %v698 = vadd.f32 0.0, %v697
    %699 = vmatmul.f32.gmra.mxu0 1.0
    %v700 = vpop.f32.mrf.mxu0
    %v701 = vadd.f32 0.0, %v700
    %702 = vdwg.mxu0
    %v703 = vmul.f32 %v659, %v659
    %v704 = vmul.f32 %v662, %v662
    %705 = vadd.xlane.f32.xlu0 %v703
    %v706 = vpop.xlane.xlu0 %705
    %707 = vadd.xlane.f32.xlu0 %v704
    %v708 = vpop.xlane.xlu0 %707
    %v709 = vrsqrt.pop %v706
    %v710 = vmul.f32 %v709, %v706
    %v711 = vmul.f32 %v710, %v709
    %v712 = vmul.f32 0.5, %v711
    %v713 = vsub.f32 1.5, %v712
    %v714 = vmul.f32 %v709, %v713
    %v715 = vmul.f32 %v706, %v714
    %vm716 = vcmp.eq.f32.partialorder %v706, inf
    %v717 = vsel %vm716, %v706, %v715
    %vm718 = vcmp.eq.f32.partialorder %v706, 0.0
    %v719 = vand.u32 %v706, 2147483648
    %v720 = vsel %vm718, %v719, %v717
    %v721 = vrsqrt.pop %v708
    %v722 = vmul.f32 %v721, %v708
    %v723 = vmul.f32 %v722, %v721
    %v724 = vmul.f32 0.5, %v723
    %v725 = vsub.f32 1.5, %v724
    %v726 = vmul.f32 %v721, %v725
    %v727 = vmul.f32 %v708, %v726
    %vm728 = vcmp.eq.f32.partialorder %v708, inf
    %v729 = vsel %vm728, %v708, %v727
    %vm730 = vcmp.eq.f32.partialorder %v708, 0.0
    %v731 = vand.u32 %v708, 2147483648
    %v732 = vsel %vm730, %v731, %v729
    %v733 = vadd.f32 %v706, %v698
    %v734 = vadd.f32 %v708, %v701
    %735 = vmatpush.xpose.msra.mxu0 %v603
    %736 = vmatpush.xpose.msra.mxu0 %v588
    %737 = vmatpush.xpose.msra.mxu0 %v573
    %738 = vmatpush.xpose.msra.mxu0 %v558
    %739 = vmatpush.xpose.msra.mxu0 %v543
    %740 = vmatpush.xpose.msra.mxu0 %v528
    %741 = vmatpush.xpose.msra.mxu0 %v513
    %742 = vmatpush.xpose.msra.mxu0 %v498
    %743 = vmatpush.xpose.msra.mxu0 %v483
    %744 = vmatpush.xpose.msra.mxu0 %v468
    %745 = vmatpush.xpose.msra.mxu0 %v453
    %746 = vmatpush.xpose.msra.mxu0 %v438
    %747 = vmatpush.xpose.msra.mxu0 %v423
    %748 = vmatpush.xpose.msra.mxu0 %v408
    %749 = vmatpush.xpose.msra.mxu0 %v393
    %750 = vmatpush.xpose.msra.mxu0 %v378
    %751 = vmatmul.f32.gmra.mxu0 %v659
    %v752 = vpop.f32.mrf.mxu0
    %v753 = vadd.f32 0.0, %v752
    %754 = vmatmul.f32.gmra.mxu0 %v662
    %v755 = vpop.f32.mrf.mxu0
    %v756 = vadd.f32 0.0, %v755
    %757 = vdwg.mxu0
    %v758 = vmul.f32 %v753, 2.0
    %v759 = vmul.f32 %v756, 2.0
    %v760 = vsub.f32 %v733, %v758
    %v761 = vsub.f32 %v734, %v759
    %v762 = vmax.f32 %v760, 1e-12
    %v763 = vmax.f32 %v761, 1e-12
    %764 = vmatpush.xpose.msra.mxu0 %v603
    %765 = vmatpush.xpose.msra.mxu0 %v588
    %766 = vmatpush.xpose.msra.mxu0 %v573
    %767 = vmatpush.xpose.msra.mxu0 %v558
    %768 = vmatpush.xpose.msra.mxu0 %v543
    %769 = vmatpush.xpose.msra.mxu0 %v528
    %770 = vmatpush.xpose.msra.mxu0 %v513
    %771 = vmatpush.xpose.msra.mxu0 %v498
    %772 = vmatpush.xpose.msra.mxu0 %v483
    %773 = vmatpush.xpose.msra.mxu0 %v468
    %774 = vmatpush.xpose.msra.mxu0 %v453
    %775 = vmatpush.xpose.msra.mxu0 %v438
    %776 = vmatpush.xpose.msra.mxu0 %v423
    %777 = vmatpush.xpose.msra.mxu0 %v408
    %778 = vmatpush.xpose.msra.mxu0 %v393
    %779 = vmatpush.xpose.msra.mxu0 %v378
    %780 = vmatmul.f32.gmra.mxu0 %v92
    %v781 = vpop.f32.mrf.mxu0
    %v782 = vadd.f32 0.0, %v781
    %783 = vmatmul.f32.gmra.mxu0 %v107
    %v784 = vpop.f32.mrf.mxu0
    %v785 = vadd.f32 0.0, %v784
    %786 = vdwg.mxu0
    %vm787 = vcmp.ge.f32.partialorder %v624, 0.0
    %vm788 = vcmp.lt.f32.partialorder %v624, 8.0
    %vm789 = vmand %vm787, %vm788
    %v790 = vsel %vm789, %v782, -1e+30
    %v791 = vsel %vm789, %v785, -1e+30
    %792 = vmax.xlane.f32.xlu0 %v790
    %v793 = vpop.xlane.xlu0 %792
    %794 = vmax.xlane.f32.xlu0 %v791
    %v795 = vpop.xlane.xlu0 %794
    %v796 = vsub.f32 %v782, %v793
    %v797 = vsub.f32 %v785, %v795
    %v798 = vmul.f32 %v796, 1.442695
    %v799 = vpow.pop %v798
    %v800 = vmul.f32 %v797, 1.442695
    %v801 = vpow.pop %v800
    %v802 = vsel %vm789, %v799, 0.0
    %v803 = vsel %vm789, %v801, 0.0
    %804 = vadd.xlane.f32.xlu0 %v802
    %v805 = vpop.xlane.xlu0 %804
    %806 = vadd.xlane.f32.xlu0 %v803
    %v807 = vpop.xlane.xlu0 %806
    %v808 = vlog2.pop %v805
    %v809 = vmul.f32 %v808, 0.6931472
    %v810 = vlog2.pop %v807
    %v811 = vmul.f32 %v810, 0.6931472
    %v812 = vadd.f32 %v793, %v809
    %v813 = vadd.f32 %v795, %v811
    %v814 = vsel %vm789, %v812, 0.0
    %v815 = vsel %vm789, %v813, 0.0
    %vm816 = vcmp.ge.f32.partialorder %v624, 8.0
    %vm817 = vcmp.lt.f32.partialorder %v624, 16.0
    %vm818 = vmand %vm816, %vm817
    %v819 = vsel %vm818, %v782, -1e+30
    %v820 = vsel %vm818, %v785, -1e+30
    %821 = vmax.xlane.f32.xlu0 %v819
    %v822 = vpop.xlane.xlu0 %821
    %823 = vmax.xlane.f32.xlu0 %v820
    %v824 = vpop.xlane.xlu0 %823
    %v825 = vsub.f32 %v782, %v822
    %v826 = vsub.f32 %v785, %v824
    %v827 = vmul.f32 %v825, 1.442695
    %v828 = vpow.pop %v827
    %v829 = vmul.f32 %v826, 1.442695
    %v830 = vpow.pop %v829
    %v831 = vsel %vm818, %v828, 0.0
    %v832 = vsel %vm818, %v830, 0.0
    %833 = vadd.xlane.f32.xlu0 %v831
    %v834 = vpop.xlane.xlu0 %833
    %835 = vadd.xlane.f32.xlu0 %v832
    %v836 = vpop.xlane.xlu0 %835
    %v837 = vlog2.pop %v834
    %v838 = vmul.f32 %v837, 0.6931472
    %v839 = vlog2.pop %v836
    %v840 = vmul.f32 %v839, 0.6931472
    %v841 = vadd.f32 %v822, %v838
    %v842 = vadd.f32 %v824, %v840
    %v843 = vsel %vm818, %v841, %v814
    %v844 = vsel %vm818, %v842, %v815
    %vm845 = vcmp.ge.f32.partialorder %v624, 16.0
    %vm846 = vcmp.lt.f32.partialorder %v624, 24.0
    %vm847 = vmand %vm845, %vm846
    %v848 = vsel %vm847, %v782, -1e+30
    %v849 = vsel %vm847, %v785, -1e+30
    %850 = vmax.xlane.f32.xlu0 %v848
    %v851 = vpop.xlane.xlu0 %850
    %852 = vmax.xlane.f32.xlu0 %v849
    %v853 = vpop.xlane.xlu0 %852
    %v854 = vsub.f32 %v782, %v851
    %v855 = vsub.f32 %v785, %v853
    %v856 = vmul.f32 %v854, 1.442695
    %v857 = vpow.pop %v856
    %v858 = vmul.f32 %v855, 1.442695
    %v859 = vpow.pop %v858
    %v860 = vsel %vm847, %v857, 0.0
    %v861 = vsel %vm847, %v859, 0.0
    %862 = vadd.xlane.f32.xlu0 %v860
    %v863 = vpop.xlane.xlu0 %862
    %864 = vadd.xlane.f32.xlu0 %v861
    %v865 = vpop.xlane.xlu0 %864
    %v866 = vlog2.pop %v863
    %v867 = vmul.f32 %v866, 0.6931472
    %v868 = vlog2.pop %v865
    %v869 = vmul.f32 %v868, 0.6931472
    %v870 = vadd.f32 %v851, %v867
    %v871 = vadd.f32 %v853, %v869
    %v872 = vsel %vm847, %v870, %v843
    %v873 = vsel %vm847, %v871, %v844
    %v874 = vsub.f32 %v782, %v872
    %v875 = vsub.f32 %v785, %v873
    %876 = vst [vmem:[#allocation4] sm:$0xff] %v874
    %877 = vst [vmem:[#allocation4 + $0x8] sm:$0xff] %v875
    %v878 = vmul.f32 %v44, 8.0
    %v879 = vmul.f32 %v45, 8.0
    %881 = vset.pattern.permute.xlu0 0
    %882 = vperm.xlu0 %881, %v878
    %v883 = vpop.permute.xlu0 %882
    %886 = vset.pattern.permute.xlu0 0
    %887 = vperm.xlu0 %886, %v879
    %v888 = vpop.permute.xlu0 %887
    %vm890 = vcmp.ge.f32.partialorder %v624, %v883
    %vm891 = vcmp.ge.f32.partialorder %v624, %v888
    %v892 = vadd.f32 %v44, 1.0
    %v893 = vadd.f32 %v45, 1.0
    %v894 = vmul.f32 %v892, 8.0
    %v895 = vmul.f32 %v893, 8.0
    %897 = vset.pattern.permute.xlu0 0
    %898 = vperm.xlu0 %897, %v894
    %v899 = vpop.permute.xlu0 %898
    %902 = vset.pattern.permute.xlu0 0
    %903 = vperm.xlu0 %902, %v895
    %v904 = vpop.permute.xlu0 %903
    %vm906 = vcmp.lt.f32.partialorder %v624, %v899
    %vm907 = vcmp.lt.f32.partialorder %v624, %v904
    %vm908 = vmand %vm890, %vm906
    %vm909 = vmand %vm891, %vm907
    %v910 = vsel %vm789, %v762, 1e+30
    %v911 = vsel %vm789, %v763, 1e+30
    %912 = vmin.xlane.f32.xlu0 %v910
    %v913 = vpop.xlane.xlu0 %912
    %914 = vmin.xlane.f32.xlu0 %v911
    %v915 = vpop.xlane.xlu0 %914
    %vm916 = vcmp.eq.f32.partialorder %v910, %v913
    %vm917 = vcmp.eq.f32.partialorder %v911, %v915
    %v918 = vsel %vm916, %v624, 128.0
    %v919 = vsel %vm917, %v624, 128.0
    %920 = vmin.xlane.f32.xlu0 %v918
    %v921 = vpop.xlane.xlu0 %920
    %922 = vmin.xlane.f32.xlu0 %v919
    %v923 = vpop.xlane.xlu0 %922
    %vm924 = vcmp.eq.f32.partialorder %v624, %v921
    %vm925 = vcmp.eq.f32.partialorder %v624, %v923
    %v926 = vsel %vm924, 1, 0
    %v927 = vsel %vm925, 1, 0
    %v928 = vcvt.s32.f32 %v926
    %v929 = vcvt.s32.f32 %v927
    %930 = vmatpush.msra.mxu0 %v603
    %931 = vmatpush.msra.mxu0 %v588
    %932 = vmatpush.msra.mxu0 %v573
    %933 = vmatpush.msra.mxu0 %v558
    %934 = vmatpush.msra.mxu0 %v543
    %935 = vmatpush.msra.mxu0 %v528
    %936 = vmatpush.msra.mxu0 %v513
    %937 = vmatpush.msra.mxu0 %v498
    %938 = vmatpush.msra.mxu0 %v483
    %939 = vmatpush.msra.mxu0 %v468
    %940 = vmatpush.msra.mxu0 %v453
    %941 = vmatpush.msra.mxu0 %v438
    %942 = vmatpush.msra.mxu0 %v423
    %943 = vmatpush.msra.mxu0 %v408
    %944 = vmatpush.msra.mxu0 %v393
    %945 = vmatpush.msra.mxu0 %v378
    %946 = vmatmul.f32.gmra.mxu0 %v928
    %v947 = vpop.f32.mrf.mxu0
    %v948 = vadd.f32 0.0, %v947
    %949 = vmatmul.f32.gmra.mxu0 %v929
    %v950 = vpop.f32.mrf.mxu0
    %v951 = vadd.f32 0.0, %v950
    %952 = vdwg.mxu0
    %v953 = vmul.f32 %v948, %v948
    %v954 = vmul.f32 %v951, %v951
    %955 = vadd.xlane.f32.xlu0 %v953
    %v956 = vpop.xlane.xlu0 %955
    %957 = vadd.xlane.f32.xlu0 %v954
    %v958 = vpop.xlane.xlu0 %957
    %v959 = vadd.f32 %v956, %v698
    %v960 = vadd.f32 %v958, %v701
    %961 = vmatpush.xpose.msra.mxu0 %v603
    %962 = vmatpush.xpose.msra.mxu0 %v588
    %963 = vmatpush.xpose.msra.mxu0 %v573
    %964 = vmatpush.xpose.msra.mxu0 %v558
    %965 = vmatpush.xpose.msra.mxu0 %v543
    %966 = vmatpush.xpose.msra.mxu0 %v528
    %967 = vmatpush.xpose.msra.mxu0 %v513
    %968 = vmatpush.xpose.msra.mxu0 %v498
    %969 = vmatpush.xpose.msra.mxu0 %v483
    %970 = vmatpush.xpose.msra.mxu0 %v468
    %971 = vmatpush.xpose.msra.mxu0 %v453
    %972 = vmatpush.xpose.msra.mxu0 %v438
    %973 = vmatpush.xpose.msra.mxu0 %v423
    %974 = vmatpush.xpose.msra.mxu0 %v408
    %975 = vmatpush.xpose.msra.mxu0 %v393
    %976 = vmatpush.xpose.msra.mxu0 %v378
    %977 = vmatmul.f32.gmra.mxu0 %v948
    %v978 = vpop.f32.mrf.mxu0
    %v979 = vadd.f32 0.0, %v978
    %980 = vmatmul.f32.gmra.mxu0 %v951
    %v981 = vpop.f32.mrf.mxu0
    %v982 = vadd.f32 0.0, %v981
    %983 = vdwg.mxu0
    %v984 = vmul.f32 %v979, 2.0
    %v985 = vmul.f32 %v982, 2.0
    %v986 = vsub.f32 %v959, %v984
    %v987 = vsub.f32 %v960, %v985
    %v988 = vmax.f32 %v986, 1e-12
    %v989 = vmax.f32 %v987, 1e-12
    %v990 = vsel %vm908, %v988, 1e+30
    %v991 = vsel %vm909, %v989, 1e+30
    %992 = vmin.xlane.f32.xlu0 %v990
    %v993 = vpop.xlane.xlu0 %992
    %994 = vmin.xlane.f32.xlu0 %v991
    %v995 = vpop.xlane.xlu0 %994
    %vm996 = vcmp.eq.f32.partialorder %v990, %v993
    %vm997 = vcmp.eq.f32.partialorder %v991, %v995
    %v998 = vsel %vm996, %v624, 128.0
    %v999 = vsel %vm997, %v624, 128.0
    %1000 = vmin.xlane.f32.xlu0 %v998
    %v1001 = vpop.xlane.xlu0 %1000
    %1002 = vmin.xlane.f32.xlu0 %v999
    %v1003 = vpop.xlane.xlu0 %1002
    %v1004 = vsub.f32 %v1001, %v878
    %v1005 = vsub.f32 %v1003, %v879
    %v1006 = vmul.f32 %v659, %v948
    %v1007 = vmul.f32 %v662, %v951
    %1008 = vadd.xlane.f32.xlu0 %v1006
    %v1009 = vpop.xlane.xlu0 %1008
    %1010 = vadd.xlane.f32.xlu0 %v1007
    %v1011 = vpop.xlane.xlu0 %1010
    %v1012 = vrsqrt.pop %v956
    %v1013 = vmul.f32 %v1012, %v956
    %v1014 = vmul.f32 %v1013, %v1012
    %v1015 = vmul.f32 0.5, %v1014
    %v1016 = vsub.f32 1.5, %v1015
    %v1017 = vmul.f32 %v1012, %v1016
    %v1018 = vmul.f32 %v956, %v1017
    %vm1019 = vcmp.eq.f32.partialorder %v956, inf
    %v1020 = vsel %vm1019, %v956, %v1018
    %vm1021 = vcmp.eq.f32.partialorder %v956, 0.0
    %v1022 = vand.u32 %v956, 2147483648
    %v1023 = vsel %vm1021, %v1022, %v1020
    %v1024 = vrsqrt.pop %v958
    %v1025 = vmul.f32 %v1024, %v958
    %v1026 = vmul.f32 %v1025, %v1024
    %v1027 = vmul.f32 0.5, %v1026
    %v1028 = vsub.f32 1.5, %v1027
    %v1029 = vmul.f32 %v1024, %v1028
    %v1030 = vmul.f32 %v958, %v1029
    %vm1031 = vcmp.eq.f32.partialorder %v958, inf
    %v1032 = vsel %vm1031, %v958, %v1030
    %vm1033 = vcmp.eq.f32.partialorder %v958, 0.0
    %v1034 = vand.u32 %v958, 2147483648
    %v1035 = vsel %vm1033, %v1034, %v1032
    %v1036 = vmul.f32 %v720, %v1023
    %v1037 = vmul.f32 %v732, %v1035
    %v1038 = vmax.f32 %v1036, 1e-08
    %v1039 = vmax.f32 %v1037, 1e-08
    %v1040 = vrcp.pop %v1038
    %v1041 = vmul.f32 %v1038, %v1040
    %v1042 = vsub.f32 1.0, %v1041
    %v1043 = vmul.f32 %v1040, %v1042
    %v1044 = vadd.f32 %v1040, %v1043
    %vm1045 = vweird.f32 %v1038
    %vm1046 = vweird.f32 %v1040
    %vm1047 = vmor %vm1045, %vm1046
    %v1048 = vsel %vm1047, %v1040, %v1044
    %v1049 = vand.u32 2147483647, %v1038
    %vm1050 = vcmp.eq.f32.partialorder %v1049, 8.507059e+37
    %v1051 = vand.u32 %v1038, 2147483648
    %v1052 = vor.u32 1.1754944e-38, %v1051
    %v1053 = vsel %vm1050, %v1052, %v1048
    %v1054 = vmul.f32 %v1009, %v1053
    %v1055 = vrcp.pop %v1039
    %v1056 = vmul.f32 %v1039, %v1055
    %v1057 = vsub.f32 1.0, %v1056
    %v1058 = vmul.f32 %v1055, %v1057
    %v1059 = vadd.f32 %v1055, %v1058
    %vm1060 = vweird.f32 %v1039
    %vm1061 = vweird.f32 %v1055
    %vm1062 = vmor %vm1060, %vm1061
    %v1063 = vsel %vm1062, %v1055, %v1059
    %v1064 = vand.u32 2147483647, %v1039
    %vm1065 = vcmp.eq.f32.partialorder %v1064, 8.507059e+37
    %v1066 = vand.u32 %v1039, 2147483648
    %v1067 = vor.u32 1.1754944e-38, %v1066
    %v1068 = vsel %vm1065, %v1067, %v1063
    %v1069 = vmul.f32 %v1011, %v1068
    %vm1070 = vcmp.eq.f32.partialorder %v624, 0.0
    %v1071 = vsel %vm1070, %v921, 0.0
    %v1072 = vsel %vm1070, %v923, 0.0
    %vm1073 = vcmp.eq.f32.partialorder %v624, 3.0
    %1075 = vset.pattern.permute.xlu0 0
    %1076 = vperm.xlu0 %1075, %v1004
    %v1077 = vpop.permute.xlu0 %1076
    %1080 = vset.pattern.permute.xlu0 0
    %1081 = vperm.xlu0 %1080, %v1005
    %v1082 = vpop.permute.xlu0 %1081
    %v1084 = vsel %vm1073, %v1077, %v1071
    %v1085 = vsel %vm1073, %v1082, %v1072
    %vm1086 = vcmp.eq.f32.partialorder %v624, 6.0
    %v1087 = vsel %vm1086, %v1054, %v1084
    %v1088 = vsel %vm1086, %v1069, %v1085
    %v1089 = vsel %vm818, %v762, 1e+30
    %v1090 = vsel %vm818, %v763, 1e+30
    %1091 = vmin.xlane.f32.xlu0 %v1089
    %v1092 = vpop.xlane.xlu0 %1091
    %1093 = vmin.xlane.f32.xlu0 %v1090
    %v1094 = vpop.xlane.xlu0 %1093
    %vm1095 = vcmp.eq.f32.partialorder %v1089, %v1092
    %vm1096 = vcmp.eq.f32.partialorder %v1090, %v1094
    %v1097 = vsel %vm1095, %v624, 128.0
    %v1098 = vsel %vm1096, %v624, 128.0
    %1099 = vmin.xlane.f32.xlu0 %v1097
    %v1100 = vpop.xlane.xlu0 %1099
    %1101 = vmin.xlane.f32.xlu0 %v1098
    %v1102 = vpop.xlane.xlu0 %1101
    %v1103 = vsub.f32 %v1100, 8.0
    %v1104 = vsub.f32 %v1102, 8.0
    %vm1105 = vcmp.eq.f32.partialorder %v624, %v1100
    %vm1106 = vcmp.eq.f32.partialorder %v624, %v1102
    %v1107 = vsel %vm1105, 1, 0
    %v1108 = vsel %vm1106, 1, 0
    %v1109 = vcvt.s32.f32 %v1107
    %v1110 = vcvt.s32.f32 %v1108
    %1111 = vmatpush.msra.mxu0 %v603
    %1112 = vmatpush.msra.mxu0 %v588
    %1113 = vmatpush.msra.mxu0 %v573
    %1114 = vmatpush.msra.mxu0 %v558
    %1115 = vmatpush.msra.mxu0 %v543
    %1116 = vmatpush.msra.mxu0 %v528
    %1117 = vmatpush.msra.mxu0 %v513
    %1118 = vmatpush.msra.mxu0 %v498
    %1119 = vmatpush.msra.mxu0 %v483
    %1120 = vmatpush.msra.mxu0 %v468
    %1121 = vmatpush.msra.mxu0 %v453
    %1122 = vmatpush.msra.mxu0 %v438
    %1123 = vmatpush.msra.mxu0 %v423
    %1124 = vmatpush.msra.mxu0 %v408
    %1125 = vmatpush.msra.mxu0 %v393
    %1126 = vmatpush.msra.mxu0 %v378
    %1127 = vmatmul.f32.gmra.mxu0 %v1109
    %v1128 = vpop.f32.mrf.mxu0
    %v1129 = vadd.f32 0.0, %v1128
    %1130 = vmatmul.f32.gmra.mxu0 %v1110
    %v1131 = vpop.f32.mrf.mxu0
    %v1132 = vadd.f32 0.0, %v1131
    %1133 = vdwg.mxu0
    %v1134 = vmul.f32 %v1129, %v1129
    %v1135 = vmul.f32 %v1132, %v1132
    %1136 = vadd.xlane.f32.xlu0 %v1134
    %v1137 = vpop.xlane.xlu0 %1136
    %1138 = vadd.xlane.f32.xlu0 %v1135
    %v1139 = vpop.xlane.xlu0 %1138
    %v1140 = vadd.f32 %v1137, %v698
    %v1141 = vadd.f32 %v1139, %v701
    %1142 = vmatpush.xpose.msra.mxu0 %v603
    %1143 = vmatpush.xpose.msra.mxu0 %v588
    %1144 = vmatpush.xpose.msra.mxu0 %v573
    %1145 = vmatpush.xpose.msra.mxu0 %v558
    %1146 = vmatpush.xpose.msra.mxu0 %v543
    %1147 = vmatpush.xpose.msra.mxu0 %v528
    %1148 = vmatpush.xpose.msra.mxu0 %v513
    %1149 = vmatpush.xpose.msra.mxu0 %v498
    %1150 = vmatpush.xpose.msra.mxu0 %v483
    %1151 = vmatpush.xpose.msra.mxu0 %v468
    %1152 = vmatpush.xpose.msra.mxu0 %v453
    %1153 = vmatpush.xpose.msra.mxu0 %v438
    %1154 = vmatpush.xpose.msra.mxu0 %v423
    %1155 = vmatpush.xpose.msra.mxu0 %v408
    %1156 = vmatpush.xpose.msra.mxu0 %v393
    %1157 = vmatpush.xpose.msra.mxu0 %v378
    %1158 = vmatmul.f32.gmra.mxu0 %v1129
    %v1159 = vpop.f32.mrf.mxu0
    %v1160 = vadd.f32 0.0, %v1159
    %1161 = vmatmul.f32.gmra.mxu0 %v1132
    %v1162 = vpop.f32.mrf.mxu0
    %v1163 = vadd.f32 0.0, %v1162
    %1164 = vdwg.mxu0
    %v1165 = vmul.f32 %v1160, 2.0
    %v1166 = vmul.f32 %v1163, 2.0
    %v1167 = vsub.f32 %v1140, %v1165
    %v1168 = vsub.f32 %v1141, %v1166
    %v1169 = vmax.f32 %v1167, 1e-12
    %v1170 = vmax.f32 %v1168, 1e-12
    %v1171 = vsel %vm908, %v1169, 1e+30
    %v1172 = vsel %vm909, %v1170, 1e+30
    %1173 = vmin.xlane.f32.xlu0 %v1171
    %v1174 = vpop.xlane.xlu0 %1173
    %1175 = vmin.xlane.f32.xlu0 %v1172
    %v1176 = vpop.xlane.xlu0 %1175
    %vm1177 = vcmp.eq.f32.partialorder %v1171, %v1174
    %vm1178 = vcmp.eq.f32.partialorder %v1172, %v1176
    %v1179 = vsel %vm1177, %v624, 128.0
    %v1180 = vsel %vm1178, %v624, 128.0
    %1181 = vmin.xlane.f32.xlu0 %v1179
    %v1182 = vpop.xlane.xlu0 %1181
    %1183 = vmin.xlane.f32.xlu0 %v1180
    %v1184 = vpop.xlane.xlu0 %1183
    %v1185 = vsub.f32 %v1182, %v878
    %v1186 = vsub.f32 %v1184, %v879
    %v1187 = vmul.f32 %v659, %v1129
    %v1188 = vmul.f32 %v662, %v1132
    %1189 = vadd.xlane.f32.xlu0 %v1187
    %v1190 = vpop.xlane.xlu0 %1189
    %1191 = vadd.xlane.f32.xlu0 %v1188
    %v1192 = vpop.xlane.xlu0 %1191
    %v1193 = vrsqrt.pop %v1137
    %v1194 = vmul.f32 %v1193, %v1137
    %v1195 = vmul.f32 %v1194, %v1193
    %v1196 = vmul.f32 0.5, %v1195
    %v1197 = vsub.f32 1.5, %v1196
    %v1198 = vmul.f32 %v1193, %v1197
    %v1199 = vmul.f32 %v1137, %v1198
    %vm1200 = vcmp.eq.f32.partialorder %v1137, inf
    %v1201 = vsel %vm1200, %v1137, %v1199
    %vm1202 = vcmp.eq.f32.partialorder %v1137, 0.0
    %v1203 = vand.u32 %v1137, 2147483648
    %v1204 = vsel %vm1202, %v1203, %v1201
    %v1205 = vrsqrt.pop %v1139
    %v1206 = vmul.f32 %v1205, %v1139
    %v1207 = vmul.f32 %v1206, %v1205
    %v1208 = vmul.f32 0.5, %v1207
    %v1209 = vsub.f32 1.5, %v1208
    %v1210 = vmul.f32 %v1205, %v1209
    %v1211 = vmul.f32 %v1139, %v1210
    %vm1212 = vcmp.eq.f32.partialorder %v1139, inf
    %v1213 = vsel %vm1212, %v1139, %v1211
    %vm1214 = vcmp.eq.f32.partialorder %v1139, 0.0
    %v1215 = vand.u32 %v1139, 2147483648
    %v1216 = vsel %vm1214, %v1215, %v1213
    %v1217 = vmul.f32 %v720, %v1204
    %v1218 = vmul.f32 %v732, %v1216
    %v1219 = vmax.f32 %v1217, 1e-08
    %v1220 = vmax.f32 %v1218, 1e-08
    %v1221 = vrcp.pop %v1219
    %v1222 = vmul.f32 %v1219, %v1221
    %v1223 = vsub.f32 1.0, %v1222
    %v1224 = vmul.f32 %v1221, %v1223
    %v1225 = vadd.f32 %v1221, %v1224
    %vm1226 = vweird.f32 %v1219
    %vm1227 = vweird.f32 %v1221
    %vm1228 = vmor %vm1226, %vm1227
    %v1229 = vsel %vm1228, %v1221, %v1225
    %v1230 = vand.u32 2147483647, %v1219
    %vm1231 = vcmp.eq.f32.partialorder %v1230, 8.507059e+37
    %v1232 = vand.u32 %v1219, 2147483648
    %v1233 = vor.u32 1.1754944e-38, %v1232
    %v1234 = vsel %vm1231, %v1233, %v1229
    %v1235 = vmul.f32 %v1190, %v1234
    %v1236 = vrcp.pop %v1220
    %v1237 = vmul.f32 %v1220, %v1236
    %v1238 = vsub.f32 1.0, %v1237
    %v1239 = vmul.f32 %v1236, %v1238
    %v1240 = vadd.f32 %v1236, %v1239
    %vm1241 = vweird.f32 %v1220
    %vm1242 = vweird.f32 %v1236
    %vm1243 = vmor %vm1241, %vm1242
    %v1244 = vsel %vm1243, %v1236, %v1240
    %v1245 = vand.u32 2147483647, %v1220
    %vm1246 = vcmp.eq.f32.partialorder %v1245, 8.507059e+37
    %v1247 = vand.u32 %v1220, 2147483648
    %v1248 = vor.u32 1.1754944e-38, %v1247
    %v1249 = vsel %vm1246, %v1248, %v1244
    %v1250 = vmul.f32 %v1192, %v1249
    %vm1251 = vcmp.eq.f32.partialorder %v624, 1.0
    %v1252 = vsel %vm1251, %v1103, %v1087
    %v1253 = vsel %vm1251, %v1104, %v1088
    %vm1254 = vcmp.eq.f32.partialorder %v624, 4.0
    %1256 = vset.pattern.permute.xlu0 0
    %1257 = vperm.xlu0 %1256, %v1185
    %v1258 = vpop.permute.xlu0 %1257
    %1261 = vset.pattern.permute.xlu0 0
    %1262 = vperm.xlu0 %1261, %v1186
    %v1263 = vpop.permute.xlu0 %1262
    %v1265 = vsel %vm1254, %v1258, %v1252
    %v1266 = vsel %vm1254, %v1263, %v1253
    %vm1267 = vcmp.eq.f32.partialorder %v624, 7.0
    %v1268 = vsel %vm1267, %v1235, %v1265
    %v1269 = vsel %vm1267, %v1250, %v1266
    %v1270 = vsel %vm847, %v762, 1e+30
    %v1271 = vsel %vm847, %v763, 1e+30
    %1272 = vmin.xlane.f32.xlu0 %v1270
    %v1273 = vpop.xlane.xlu0 %1272
    %1274 = vmin.xlane.f32.xlu0 %v1271
    %v1275 = vpop.xlane.xlu0 %1274
    %vm1276 = vcmp.eq.f32.partialorder %v1270, %v1273
    %vm1277 = vcmp.eq.f32.partialorder %v1271, %v1275
    %v1278 = vsel %vm1276, %v624, 128.0
    %v1279 = vsel %vm1277, %v624, 128.0
    %1280 = vmin.xlane.f32.xlu0 %v1278
    %v1281 = vpop.xlane.xlu0 %1280
    %1282 = vmin.xlane.f32.xlu0 %v1279
    %v1283 = vpop.xlane.xlu0 %1282
    %v1284 = vsub.f32 %v1281, 16.0
    %v1285 = vsub.f32 %v1283, 16.0
    %vm1286 = vcmp.eq.f32.partialorder %v624, %v1281
    %vm1287 = vcmp.eq.f32.partialorder %v624, %v1283
    %v1288 = vsel %vm1286, 1, 0
    %v1289 = vsel %vm1287, 1, 0
    %v1290 = vcvt.s32.f32 %v1288
    %v1291 = vcvt.s32.f32 %v1289
    %1292 = vmatpush.msra.mxu0 %v603
    %1293 = vmatpush.msra.mxu0 %v588
    %1294 = vmatpush.msra.mxu0 %v573
    %1295 = vmatpush.msra.mxu0 %v558
    %1296 = vmatpush.msra.mxu0 %v543
    %1297 = vmatpush.msra.mxu0 %v528
    %1298 = vmatpush.msra.mxu0 %v513
    %1299 = vmatpush.msra.mxu0 %v498
    %1300 = vmatpush.msra.mxu0 %v483
    %1301 = vmatpush.msra.mxu0 %v468
    %1302 = vmatpush.msra.mxu0 %v453
    %1303 = vmatpush.msra.mxu0 %v438
    %1304 = vmatpush.msra.mxu0 %v423
    %1305 = vmatpush.msra.mxu0 %v408
    %1306 = vmatpush.msra.mxu0 %v393
    %1307 = vmatpush.msra.mxu0 %v378
    %1308 = vmatmul.f32.gmra.mxu0 %v1290
    %v1309 = vpop.f32.mrf.mxu0
    %v1310 = vadd.f32 0.0, %v1309
    %1311 = vmatmul.f32.gmra.mxu0 %v1291
    %v1312 = vpop.f32.mrf.mxu0
    %v1313 = vadd.f32 0.0, %v1312
    %1314 = vdwg.mxu0
    %v1315 = vmul.f32 %v1310, %v1310
    %v1316 = vmul.f32 %v1313, %v1313
    %1317 = vadd.xlane.f32.xlu0 %v1315
    %v1318 = vpop.xlane.xlu0 %1317
    %1319 = vadd.xlane.f32.xlu0 %v1316
    %v1320 = vpop.xlane.xlu0 %1319
    %v1321 = vadd.f32 %v1318, %v698
    %v1322 = vadd.f32 %v1320, %v701
    %1323 = vmatpush.xpose.msra.mxu0 %v603
    %1324 = vmatpush.xpose.msra.mxu0 %v588
    %1325 = vmatpush.xpose.msra.mxu0 %v573
    %1326 = vmatpush.xpose.msra.mxu0 %v558
    %1327 = vmatpush.xpose.msra.mxu0 %v543
    %1328 = vmatpush.xpose.msra.mxu0 %v528
    %1329 = vmatpush.xpose.msra.mxu0 %v513
    %1330 = vmatpush.xpose.msra.mxu0 %v498
    %1331 = vmatpush.xpose.msra.mxu0 %v483
    %1332 = vmatpush.xpose.msra.mxu0 %v468
    %1333 = vmatpush.xpose.msra.mxu0 %v453
    %1334 = vmatpush.xpose.msra.mxu0 %v438
    %1335 = vmatpush.xpose.msra.mxu0 %v423
    %1336 = vmatpush.xpose.msra.mxu0 %v408
    %1337 = vmatpush.xpose.msra.mxu0 %v393
    %1338 = vmatpush.xpose.msra.mxu0 %v378
    %1339 = vmatmul.f32.gmra.mxu0 %v1310
    %v1340 = vpop.f32.mrf.mxu0
    %v1341 = vadd.f32 0.0, %v1340
    %1342 = vmatmul.f32.gmra.mxu0 %v1313
    %v1343 = vpop.f32.mrf.mxu0
    %v1344 = vadd.f32 0.0, %v1343
    %1345 = vdwg.mxu0
    %v1346 = vmul.f32 %v1341, 2.0
    %v1347 = vmul.f32 %v1344, 2.0
    %v1348 = vsub.f32 %v1321, %v1346
    %v1349 = vsub.f32 %v1322, %v1347
    %v1350 = vmax.f32 %v1348, 1e-12
    %v1351 = vmax.f32 %v1349, 1e-12
    %v1352 = vsel %vm908, %v1350, 1e+30
    %v1353 = vsel %vm909, %v1351, 1e+30
    %1354 = vmin.xlane.f32.xlu0 %v1352
    %v1355 = vpop.xlane.xlu0 %1354
    %1356 = vmin.xlane.f32.xlu0 %v1353
    %v1357 = vpop.xlane.xlu0 %1356
    %vm1358 = vcmp.eq.f32.partialorder %v1352, %v1355
    %vm1359 = vcmp.eq.f32.partialorder %v1353, %v1357
    %v1360 = vsel %vm1358, %v624, 128.0
    %v1361 = vsel %vm1359, %v624, 128.0
    %1362 = vmin.xlane.f32.xlu0 %v1360
    %v1363 = vpop.xlane.xlu0 %1362
    %1364 = vmin.xlane.f32.xlu0 %v1361
    %v1365 = vpop.xlane.xlu0 %1364
    %v1366 = vsub.f32 %v1363, %v878
    %v1367 = vsub.f32 %v1365, %v879
    %v1368 = vmul.f32 %v659, %v1310
    %v1369 = vmul.f32 %v662, %v1313
    %1370 = vadd.xlane.f32.xlu0 %v1368
    %v1371 = vpop.xlane.xlu0 %1370
    %1372 = vadd.xlane.f32.xlu0 %v1369
    %v1373 = vpop.xlane.xlu0 %1372
    %v1374 = vrsqrt.pop %v1318
    %v1375 = vmul.f32 %v1374, %v1318
    %v1376 = vmul.f32 %v1375, %v1374
    %v1377 = vmul.f32 0.5, %v1376
    %v1378 = vsub.f32 1.5, %v1377
    %v1379 = vmul.f32 %v1374, %v1378
    %v1380 = vmul.f32 %v1318, %v1379
    %vm1381 = vcmp.eq.f32.partialorder %v1318, inf
    %v1382 = vsel %vm1381, %v1318, %v1380
    %vm1383 = vcmp.eq.f32.partialorder %v1318, 0.0
    %v1384 = vand.u32 %v1318, 2147483648
    %v1385 = vsel %vm1383, %v1384, %v1382
    %v1386 = vrsqrt.pop %v1320
    %v1387 = vmul.f32 %v1386, %v1320
    %v1388 = vmul.f32 %v1387, %v1386
    %v1389 = vmul.f32 0.5, %v1388
    %v1390 = vsub.f32 1.5, %v1389
    %v1391 = vmul.f32 %v1386, %v1390
    %v1392 = vmul.f32 %v1320, %v1391
    %vm1393 = vcmp.eq.f32.partialorder %v1320, inf
    %v1394 = vsel %vm1393, %v1320, %v1392
    %vm1395 = vcmp.eq.f32.partialorder %v1320, 0.0
    %v1396 = vand.u32 %v1320, 2147483648
    %v1397 = vsel %vm1395, %v1396, %v1394
    %v1398 = vmul.f32 %v720, %v1385
    %v1399 = vmul.f32 %v732, %v1397
    %v1400 = vmax.f32 %v1398, 1e-08
    %v1401 = vmax.f32 %v1399, 1e-08
    %v1402 = vrcp.pop %v1400
    %v1403 = vmul.f32 %v1400, %v1402
    %v1404 = vsub.f32 1.0, %v1403
    %v1405 = vmul.f32 %v1402, %v1404
    %v1406 = vadd.f32 %v1402, %v1405
    %vm1407 = vweird.f32 %v1400
    %vm1408 = vweird.f32 %v1402
    %vm1409 = vmor %vm1407, %vm1408
    %v1410 = vsel %vm1409, %v1402, %v1406
    %v1411 = vand.u32 2147483647, %v1400
    %vm1412 = vcmp.eq.f32.partialorder %v1411, 8.507059e+37
    %v1413 = vand.u32 %v1400, 2147483648
    %v1414 = vor.u32 1.1754944e-38, %v1413
    %v1415 = vsel %vm1412, %v1414, %v1410
    %v1416 = vmul.f32 %v1371, %v1415
    %v1417 = vrcp.pop %v1401
    %v1418 = vmul.f32 %v1401, %v1417
    %v1419 = vsub.f32 1.0, %v1418
    %v1420 = vmul.f32 %v1417, %v1419
    %v1421 = vadd.f32 %v1417, %v1420
    %vm1422 = vweird.f32 %v1401
    %vm1423 = vweird.f32 %v1417
    %vm1424 = vmor %vm1422, %vm1423
    %v1425 = vsel %vm1424, %v1417, %v1421
    %v1426 = vand.u32 2147483647, %v1401
    %vm1427 = vcmp.eq.f32.partialorder %v1426, 8.507059e+37
    %v1428 = vand.u32 %v1401, 2147483648
    %v1429 = vor.u32 1.1754944e-38, %v1428
    %v1430 = vsel %vm1427, %v1429, %v1425
    %v1431 = vmul.f32 %v1373, %v1430
    %vm1432 = vcmp.eq.f32.partialorder %v624, 2.0
    %v1433 = vsel %vm1432, %v1284, %v1268
    %v1434 = vsel %vm1432, %v1285, %v1269
    %vm1435 = vcmp.eq.f32.partialorder %v624, 5.0
    %1437 = vset.pattern.permute.xlu0 0
    %1438 = vperm.xlu0 %1437, %v1366
    %v1439 = vpop.permute.xlu0 %1438
    %1442 = vset.pattern.permute.xlu0 0
    %1443 = vperm.xlu0 %1442, %v1367
    %v1444 = vpop.permute.xlu0 %1443
    %v1446 = vsel %vm1435, %v1439, %v1433
    %v1447 = vsel %vm1435, %v1444, %v1434
    %vm1448 = vcmp.eq.f32.partialorder %v624, 8.0
    %v1449 = vsel %vm1448, %v1416, %v1446
    %v1450 = vsel %vm1448, %v1431, %v1447
    %v1451 = vmul.f32 %v720, %v720
    %v1452 = vmul.f32 %v732, %v732
    %v1453 = vmax.f32 %v1451, 1e-08
    %v1454 = vmax.f32 %v1452, 1e-08
    %v1455 = vrcp.pop %v1453
    %v1456 = vmul.f32 %v1453, %v1455
    %v1457 = vsub.f32 1.0, %v1456
    %v1458 = vmul.f32 %v1455, %v1457
    %v1459 = vadd.f32 %v1455, %v1458
    %vm1460 = vweird.f32 %v1453
    %vm1461 = vweird.f32 %v1455
    %vm1462 = vmor %vm1460, %vm1461
    %v1463 = vsel %vm1462, %v1455, %v1459
    %v1464 = vand.u32 2147483647, %v1453
    %vm1465 = vcmp.eq.f32.partialorder %v1464, 8.507059e+37
    %v1466 = vand.u32 %v1453, 2147483648
    %v1467 = vor.u32 1.1754944e-38, %v1466
    %v1468 = vsel %vm1465, %v1467, %v1463
    %v1469 = vmul.f32 %v706, %v1468
    %v1470 = vrcp.pop %v1454
    %v1471 = vmul.f32 %v1454, %v1470
    %v1472 = vsub.f32 1.0, %v1471
    %v1473 = vmul.f32 %v1470, %v1472
    %v1474 = vadd.f32 %v1470, %v1473
    %vm1475 = vweird.f32 %v1454
    %vm1476 = vweird.f32 %v1470
    %vm1477 = vmor %vm1475, %vm1476
    %v1478 = vsel %vm1477, %v1470, %v1474
    %v1479 = vand.u32 2147483647, %v1454
    %vm1480 = vcmp.eq.f32.partialorder %v1479, 8.507059e+37
    %v1481 = vand.u32 %v1454, 2147483648
    %v1482 = vor.u32 1.1754944e-38, %v1481
    %v1483 = vsel %vm1480, %v1482, %v1478
    %v1484 = vmul.f32 %v708, %v1483
    %vm1485 = vcmp.eq.f32.partialorder %v624, 9.0
    %v1486 = vsel %vm1485, %v1469, %v1449
    %v1487 = vsel %vm1485, %v1484, %v1450
    %1488 = vst [vmem:[#allocation2] sm:$0xff] %v1486
    %1489 = vst [vmem:[#allocation2 + $0x8] sm:$0xff] %v1487
    // Predicated region
    $region18: #{_run_fused.1} parent=1 // pred_check
      _
    $region19: #{_run_fused.1} parent=1 // pred_check_branch
      %1491 = sbr.rel (0) target = $region21
    $region20: #{_run_fused.1} parent=1 // pred_region
      %1493 = vsyncadd [#allocation3], 0
      %s1494 = sshll.u32 [#allocation2], 4
      %s1495 = int_to_ptr.vmem [resolvable:$true] %s1494
      %s1496 = sshll.u32 %s4, 4
      %s1497 = int_to_ptr.hbm [resolvable:$true] %s1496
      %1502 = dma.vmem_to_hbm [thread:$0]  %s1495, 256, %s1497, [#allocation3], 128, 128, 8
    $region21: #{_run_fused.1} parent=1 // pred_fallthru
      _
    // Predicated region
    $region22: #{_run_fused.1} parent=1 // pred_check
      _
    $region23: #{_run_fused.1} parent=1 // pred_check_branch
      %1504 = sbr.rel (0) target = $region25
    $region24: #{_run_fused.1} parent=1 // pred_region
      %1506 = vsyncadd [#allocation5], 0
      %s1507 = sshll.u32 [#allocation4], 4
      %s1508 = int_to_ptr.vmem [resolvable:$true] %s1507
      %s1509 = sshll.u32 %s5, 4
      %s1510 = int_to_ptr.hbm [resolvable:$true] %s1509
      %1515 = dma.vmem_to_hbm [thread:$0]  %s1508, 256, %s1510, [#allocation5], 128, 128, 8
    $region25: #{_run_fused.1} parent=1 // pred_fallthru
      _
    // Predicated region
    $region26: #{_run_fused.1} parent=1 // pred_check
      _
    $region27: #{_run_fused.1} parent=1 // pred_check_branch
      %1517 = sbr.rel (0) target = $region29
    $region28: #{_run_fused.1} parent=1 // pred_region
      %1519 = vsyncadd [#allocation5], 0
      %s1520 = sshll.u32 [#allocation6], 4
      %s1521 = int_to_ptr.vmem [resolvable:$true] %s1520
      %s1522 = sshll.u32 %s6, 4
      %s1523 = int_to_ptr.hbm [resolvable:$true] %s1522
      %1528 = dma.vmem_to_hbm [thread:$0]  %s1521, 256, %s1523, [#allocation5], 128, 128, 8
    $region29: #{_run_fused.1} parent=1 // pred_fallthru
      _
    // Predicated region
    $region30: #{_run_fused.1} parent=1 // pred_check
      _
    $region31: #{_run_fused.1} parent=1 // pred_check_branch
      %1530 = sbr.rel (0) target = $region33
    $region32: #{_run_fused.1} parent=1 // pred_region
      %1532 = vsyncadd [#allocation8], 0
      %s1533 = sshll.u32 [#allocation7], 4
      %s1534 = int_to_ptr.vmem [resolvable:$true] %s1533
      %s1535 = sshll.u32 %s7, 4
      %s1536 = int_to_ptr.hbm [resolvable:$true] %s1535
      %1541 = dma.vmem_to_hbm [thread:$0]  %s1534, 2048, %s1536, [#allocation8], 128, 128, 8
    $region33: #{_run_fused.1} parent=1 // pred_fallthru
      _
    // Predicated region
    $region34: #{_run_fused.1} parent=1 // pred_check
      _
    $region35: #{_run_fused.1} parent=1 // pred_check_branch
      %1543 = sbr.rel (0) target = $region37
    $region36: #{_run_fused.1} parent=1 // pred_region
      %1545 = dma.done [#allocation3], 256
    $region37: #{_run_fused.1} parent=1 // pred_fallthru
      _
    // Predicated region
    $region38: #{_run_fused.1} parent=1 // pred_check
      _
    $region39: #{_run_fused.1} parent=1 // pred_check_branch
      %1547 = sbr.rel (0) target = $region41
    $region40: #{_run_fused.1} parent=1 // pred_region
      %1549 = dma.done [#allocation5], 256
    $region41: #{_run_fused.1} parent=1 // pred_fallthru
      _
    // Predicated region
    $region42: #{_run_fused.1} parent=1 // pred_check
      _
    $region43: #{_run_fused.1} parent=1 // pred_check_branch
      %1551 = sbr.rel (0) target = $region45
    $region44: #{_run_fused.1} parent=1 // pred_region
      %1553 = dma.done [#allocation5], 256
    $region45: #{_run_fused.1} parent=1 // pred_fallthru
      _
    // Predicated region
    $region46: #{_run_fused.1} parent=1 // pred_check
      _
    $region47: #{_run_fused.1} parent=1 // pred_check_branch
      %1555 = sbr.rel (0) target = $region49
    $region48: #{_run_fused.1} parent=1 // pred_region
      %1557 = dma.done [#allocation8], 2048
    $region49: #{_run_fused.1} parent=1 // pred_fallthru
      _
    %1558 = vsyncpa [#allocation3], 1
    %1559 = vsyncpa [#allocation5], 1
    %1560 = vsyncpa [#allocation8], 1

</llo_original>
